<compile_context>
chip_gen: v7x
topology: tpu7x:2x2x1
jax: 0.10.0
libtpu: 0.0.40
codegen_flags: <defaults>
</compile_context>

<pallas_src>
import functools

import numpy as np

import jax
import jax.numpy as jnp
from jax.experimental import pallas as pl
from jax.experimental.pallas import tpu as pltpu


_VMEM = pl.BlockSpec(memory_space=pltpu.MemorySpace.VMEM)


def _round_up(n, m):
    return ((n + m - 1) // m) * m


class _SlabPlan:
    """Static row layout for packing many small matrices into one 2-D slab."""

    def __init__(self, lane_w, align):
        self.lane_w = lane_w
        self.align = align
        self.layout = {}          # name -> (row0, rows, cols)
        self._rows = 0

    def add(self, name, rows, cols):
        self.layout[name] = (self._rows, rows, cols)
        self._rows += _round_up(rows, self.align)

    @property
    def rows(self):
        return max(_round_up(self._rows, 8), 8)


# ----------------------------------------------------------------------------
# Model factory: returns (prepare_params, forward)
# ----------------------------------------------------------------------------
def make_cvae(*, input_shape, layer_sizes, latent_size, ts_len, num_layers,
              decoder_proportion):
    T_total, feat = input_shape
    enc_hidden = [feat, *layer_sizes, latent_size][-2]
    dec_hidden = int(layer_sizes[::-1][0] // decoder_proportion)
    out_seq = T_total - ts_len
    out_dim = out_seq * feat
    latent = latent_size
    out_cols = _round_up(out_dim + 2 * latent, 128)

    lane_w = _round_up(max(4 * enc_hidden, 4 * dec_hidden, 2 * latent, out_dim), 128)

    # ---- bf16 slab: LSTM matmul weights (recurrent + hoisted input projections)
    wb_plan = _SlabPlan(lane_w, align=16)          # 16 = bf16 sublane pack
    for li in range(num_layers):
        d_in = feat if li == 0 else enc_hidden
        wb_plan.add(f"enc{li}_wih", d_in, 4 * enc_hidden)
        wb_plan.add(f"enc{li}_whh", enc_hidden, 4 * enc_hidden)
    wb_plan.add("dec0_wih_y", feat, 4 * dec_hidden)
    wb_plan.add("dec0_wih_z", latent, 4 * dec_hidden)
    wb_plan.add("dec0_whh", dec_hidden, 4 * dec_hidden)
    for li in range(1, num_layers):
        wb_plan.add(f"dec{li}_wih", dec_hidden, 4 * dec_hidden)
        wb_plan.add(f"dec{li}_whh", dec_hidden, 4 * dec_hidden)

    # ---- f32 slab: biases + the (tiny) mu/logvar and output heads
    wf_plan = _SlabPlan(lane_w, align=8)
    wf_plan.add("wmulv", enc_hidden, 2 * latent)
    wf_plan.add("wout", dec_hidden, out_dim)
    for li in range(num_layers):
        wf_plan.add(f"enc{li}_b", 1, 4 * enc_hidden)
    wf_plan.add("bmulv", 1, 2 * latent)
    for li in range(num_layers):
        wf_plan.add(f"dec{li}_b", 1, 4 * dec_hidden)
    wf_plan.add("bout", 1, out_dim)

    # ------------------------------------------------------------------
    # One-time weight packing (pre-transpose / pre-fuse, outside the hot path)
    # ------------------------------------------------------------------
    def prepare_params(raw):
        wb = np.zeros((wb_plan.rows, lane_w), np.float32)
        wf = np.zeros((wf_plan.rows, lane_w), np.float32)

        def put(plan, buf, name, arr2d):
            r0, nr, nc = plan.layout[name]
            a = np.asarray(arr2d, np.float32)
            assert a.shape == (nr, nc), (name, a.shape, (nr, nc))
            buf[r0:r0 + nr, :nc] = a

        for li, lp in enumerate(raw["enc_lstm"]):
            put(wb_plan, wb, f"enc{li}_wih", np.asarray(lp["w_ih"]).T)
            put(wb_plan, wb, f"enc{li}_whh", np.asarray(lp["w_hh"]).T)
            put(wf_plan, wf, f"enc{li}_b",
                (np.asarray(lp["b_ih"]) + np.asarray(lp["b_hh"]))[None, :])
        for li, lp in enumerate(raw["dec_lstm"]):
            wih_t = np.asarray(lp["w_ih"]).T
            if li == 0:
                put(wb_plan, wb, "dec0_wih_y", wih_t[:feat])
                put(wb_plan, wb, "dec0_wih_z", wih_t[feat:])
            else:
                put(wb_plan, wb, f"dec{li}_wih", wih_t)
            put(wb_plan, wb, f"dec{li}_whh", np.asarray(lp["w_hh"]).T)
            put(wf_plan, wf, f"dec{li}_b",
                (np.asarray(lp["b_ih"]) + np.asarray(lp["b_hh"]))[None, :])
        put(wf_plan, wf, "wmulv",
            np.concatenate([np.asarray(raw["fc_mu_w"]).T,
                            np.asarray(raw["fc_logvar_w"]).T], axis=1))
        put(wf_plan, wf, "bmulv",
            np.concatenate([np.asarray(raw["fc_mu_b"]),
                            np.asarray(raw["fc_logvar_b"])])[None, :])
        put(wf_plan, wf, "wout", np.asarray(raw["dec_out_w"]).T)
        put(wf_plan, wf, "bout", np.asarray(raw["dec_out_b"])[None, :])

        return {"wb": jnp.asarray(wb, jnp.bfloat16),
                "wf": jnp.asarray(wf, jnp.float32)}

    # ------------------------------------------------------------------
    # Fused forward kernel (gridless, everything VMEM-resident)
    # ------------------------------------------------------------------
    def _make_kernel(B_pad):
        def kernel(x2d_ref, eps_ref, wb_ref, wf_ref, out_ref):
            Wb = wb_ref[...]                      # (Rb, lane_w) bf16
            Wf = wf_ref[...]                      # (Rf, lane_w) f32

            def wb_(name):
                r0, nr, nc = wb_plan.layout[name]
                return Wb[r0:r0 + nr, :nc]

            def wf_(name):
                r0, nr, nc = wf_plan.layout[name]
                return Wf[r0:r0 + nr, :nc]

            def lstm(pre, whh, T, H, extra=None):
                # pre: (T*B_pad, 4H) f32 ; whh: (H, 4H) bf16 ; extra: (B_pad, 4H)
                h = jnp.zeros((B_pad, H), jnp.float32)
                c = jnp.zeros((B_pad, H), jnp.float32)
                hs = []
                for t in range(T):                # fully unrolled, T static & small
                    g_in = pre[t * B_pad:(t + 1) * B_pad, :]   # 8-row aligned
                    if extra is not None:
                        g_in = g_in + extra
                    gates = g_in + jnp.dot(h.astype(jnp.bfloat16), whh,
                                           preferred_element_type=jnp.float32)
                    sig = jax.nn.sigmoid(gates)               # one full-vreg EUP op
                    g = jnp.tanh(gates[:, 2 * H:3 * H])       # tanh only on g lanes
                    c = sig[:, H:2 * H] * c + sig[:, 0:H] * g
                    h = sig[:, 3 * H:4 * H] * jnp.tanh(c)
                    hs.append(h)
                return hs

            x2d = x2d_ref[...]                    # (T_total*B_pad, feat) bf16

            # ---------------- encoder LSTM stack ----------------
            inp = x2d
            hs = None
            for li in range(num_layers):
                pre = jnp.dot(inp, wb_(f"enc{li}_wih"),
                              preferred_element_type=jnp.float32) + wf_(f"enc{li}_b")
                hs = lstm(pre, wb_(f"enc{li}_whh"), T_total, enc_hidden)
                if li + 1 < num_layers:
                    # sublane-aligned: each piece is exactly B_pad=8 rows
                    inp = jnp.concatenate(hs, axis=0).astype(jnp.bfloat16)
            enc_last = hs[-1]                     # (B_pad, H_enc) f32

            # fused fc_mu / fc_logvar head (single f32 GEMM)
            mulv = jnp.dot(enc_last, wf_("wmulv"),
                           preferred_element_type=jnp.float32) + wf_("bmulv")
            mu = mulv[:, :latent]
            logvar = mulv[:, latent:2 * latent]

            # ---------------- reparameterize (eps supplied externally) -------
            std = jnp.exp(0.5 * logvar)
            z = mu + eps_ref[...] * std           # (B_pad, latent)

            # ---------------- decoder LSTM stack ----------------
            # TODO(synk): VaeRNNDecoder source was not provided; implemented as a
            # symmetric LSTM over the conditioned ts window followed by a Linear
            # from the last hidden state to the flattened output_shape.
            # z is constant over time: fold z @ W_ih_z + bias into one per-batch term.
            zg = jnp.dot(z.astype(jnp.bfloat16), wb_("dec0_wih_z"),
                         preferred_element_type=jnp.float32) + wf_("dec0_b")
            yg = jnp.dot(x2d[:ts_len * B_pad, :], wb_("dec0_wih_y"),
                         preferred_element_type=jnp.float32)
            hs = lstm(yg, wb_("dec0_whh"), ts_len, dec_hidden, extra=zg)
            for li in range(1, num_layers):
                inp = jnp.concatenate(hs, axis=0).astype(jnp.bfloat16)
                pre = jnp.dot(inp, wb_(f"dec{li}_wih"),
                              preferred_element_type=jnp.float32) + wf_(f"dec{li}_b")
                hs = lstm(pre, wb_(f"dec{li}_whh"), ts_len, dec_hidden)
            dec_last = hs[-1]                     # (B_pad, H_dec)

            dec_out = jnp.dot(dec_last, wf_("wout"),
                              preferred_element_type=jnp.float32) + wf_("bout")

            # single lane-dense output slab: [dec_out | mu | logvar | 0-pad]
            pad = out_cols - (out_dim + 2 * latent)
            pieces = [dec_out, mulv]
            if pad:
                pieces.append(jnp.zeros((B_pad, pad), jnp.float32))
            out_ref[...] = jnp.concatenate(pieces, axis=-1)

        return kernel

    # ------------------------------------------------------------------
    # Jitted forward wrapper (single fused pallas_call + trivial glue)
    # ------------------------------------------------------------------
    @jax.jit
    def forward(x, eps, packed):
        B = x.shape[0]
        B_pad = _round_up(max(B, 8), 8)          # f32 sublane width
        kernel = _make_kernel(B_pad)

        # glue only: time-major + pad batch to sublane tile + bf16 cast
        xt = jnp.transpose(x, (1, 0, 2)).astype(jnp.float32)        # (T, B, F)
        xt = jnp.pad(xt, ((0, 0), (0, B_pad - B), (0, 0)))
        x2d = xt.reshape(T_total * B_pad, feat).astype(jnp.bfloat16)
        eps_p = jnp.pad(eps.astype(jnp.float32), ((0, B_pad - B), (0, 0)))

        in_bytes = (x2d.size * 2 + eps_p.size * 4
                    + packed["wb"].size * 2 + packed["wf"].size * 4)
        out_bytes = B_pad * out_cols * 4
        # derived VMEM budget: inputs + output + hoisted pre-activation slabs,
        # with 2x headroom for compiler temporaries (replaces hard-coded 4 MiB)
        live = (in_bytes + out_bytes
                + 4 * T_total * B_pad * 4 * enc_hidden * num_layers
                + 4 * ts_len * B_pad * 4 * dec_hidden * num_layers)
        vmem_limit = int(min(max(2 * live + (1 << 20), 4 << 20), 32 << 20))

        flops = 2 * B_pad * (
            T_total * (feat + enc_hidden) * 4 * enc_hidden
            + T_total * 2 * enc_hidden * 4 * enc_hidden * (num_layers - 1)
            + ts_len * (feat + latent + dec_hidden) * 4 * dec_hidden
            + ts_len * 2 * dec_hidden * 4 * dec_hidden * (num_layers - 1)
            + enc_hidden * 2 * latent
            + dec_hidden * out_dim)
        transcendentals = B_pad * (num_layers * (T_total * 6 * enc_hidden
                                                 + ts_len * 6 * dec_hidden)
                                   + latent)

        slab = pl.pallas_call(
            kernel,
            out_shape=jax.ShapeDtypeStruct((B_pad, out_cols), jnp.float32),
            in_specs=[_VMEM, _VMEM, _VMEM, _VMEM],
            out_specs=_VMEM,
            compiler_params=pltpu.CompilerParams(vmem_limit_bytes=vmem_limit),
            cost_estimate=pl.CostEstimate(flops=flops,
                                          transcendentals=transcendentals,
                                          bytes_accessed=in_bytes + out_bytes),
        )(x2d, eps_p, packed["wb"], packed["wf"])

        dec_flat = slab[:B, :out_dim]
        mu = slab[:B, out_dim:out_dim + latent]
        logvar = slab[:B, out_dim + latent:out_dim + 2 * latent]

        recon = jnp.concatenate(
            [x[:, :ts_len].astype(jnp.float32),
             dec_flat.reshape(B, out_seq, feat)], axis=1)
        return recon, mu, logvar

    return prepare_params, forward


# ----------------------------------------------------------------------------
# Deterministic parameter init (PyTorch-like U(-1/sqrt(H), 1/sqrt(H)))
# ----------------------------------------------------------------------------
def init_lstm_params(key, input_size, hidden_size, num_layers):
    params = []
    scale = 1.0 / float(hidden_size) ** 0.5
    for layer in range(num_layers):
        d_in = input_size if layer == 0 else hidden_size
        key, k1, k2, k3, k4 = jax.random.split(key, 5)
        params.append(dict(
            w_ih=jax.random.uniform(k1, (4 * hidden_size, d_in), jnp.float32, -scale, scale),
            w_hh=jax.random.uniform(k2, (4 * hidden_size, hidden_size), jnp.float32, -scale, scale),
            b_ih=jax.random.uniform(k3, (4 * hidden_size,), jnp.float32, -scale, scale),
            b_hh=jax.random.uniform(k4, (4 * hidden_size,), jnp.float32, -scale, scale),
        ))
    return params, key


def init_linear(key, out_dim, in_dim):
    scale = 1.0 / float(in_dim) ** 0.5
    key, k1, k2 = jax.random.split(key, 3)
    w = jax.random.uniform(k1, (out_dim, in_dim), jnp.float32, -scale, scale)
    b = jax.random.uniform(k2, (out_dim,), jnp.float32, -scale, scale)
    return w, b, key


# ----------------------------------------------------------------------------
if __name__ == "__main__":
    # CVAE(input_shape=(16, 8), layer_sizes=[32], latent_size=4, ts_len=8,
    #      num_layers=1, decoder_proportion=2)
    input_shape = (16, 8)
    layer_sizes = [32]
    latent_size = 4
    ts_len = 8
    num_layers = 1
    decoder_proportion = 2
    B = 2

    T_total, feat = input_shape
    enc_hidden = [feat, *layer_sizes, latent_size][-2]                 # 32
    dec_hidden = int(layer_sizes[::-1][0] // decoder_proportion)       # 16
    out_seq, out_feat = T_total - ts_len, feat                         # (8, 8)

    key = jax.random.PRNGKey(0)
    raw = {}
    raw["enc_lstm"], key = init_lstm_params(key, feat, enc_hidden, num_layers)
    raw["dec_lstm"], key = init_lstm_params(key, feat + latent_size, dec_hidden, num_layers)
    raw["fc_mu_w"], raw["fc_mu_b"], key = init_linear(key, latent_size, enc_hidden)
    raw["fc_logvar_w"], raw["fc_logvar_b"], key = init_linear(key, latent_size, enc_hidden)
    raw["dec_out_w"], raw["dec_out_b"], key = init_linear(key, out_seq * out_feat, dec_hidden)

    prepare_params, forward = make_cvae(
        input_shape=input_shape, layer_sizes=layer_sizes, latent_size=latent_size,
        ts_len=ts_len, num_layers=num_layers, decoder_proportion=decoder_proportion)

    packed = prepare_params(raw)

    key, kx, keps = jax.random.split(key, 3)
    x = jax.random.normal(kx, (B, T_total, feat), jnp.float32)
    eps = jax.random.normal(keps, (B, latent_size), jnp.float32)       # torch.randn_like(std)

    recon, mu, logvar = forward(x, eps, packed)
    jax.block_until_ready(recon)

    assert recon.shape == (B, T_total, feat), recon.shape
    assert mu.shape == (B, latent_size) and logvar.shape == (B, latent_size)
    assert bool(jnp.all(jnp.isfinite(recon)))
    assert bool(jnp.all(jnp.isfinite(mu))) and bool(jnp.all(jnp.isfinite(logvar)))
    print("KERNEL_OK")
</pallas_src>

<mosaic_0001>
module attributes {stable_mosaic.version = 11 : i64} {
  func.func @kernel(%arg0: memref<128x8xbf16, #tpu.memory_space<vmem>>, %arg1: memref<8x4xf32, #tpu.memory_space<vmem>>, %arg2: memref<96x128xbf16, #tpu.memory_space<vmem>>, %arg3: memref<80x128xf32, #tpu.memory_space<vmem>>, %arg4: memref<8x128xf32, #tpu.memory_space<vmem>>) attributes {dimension_semantics = [], scalar_prefetch = 0 : i64, scratch_operands = 0 : i64, tpu.core_type = #tpu.core_type<tc>} {
    %c0 = arith.constant 0 : index
    %c0_0 = arith.constant 0 : index
    %0 = vector.load %arg2[%c0, %c0_0] : memref<96x128xbf16, #tpu.memory_space<vmem>>, vector<96x128xbf16>
    %c0_1 = arith.constant 0 : index
    %c0_2 = arith.constant 0 : index
    %1 = vector.load %arg3[%c0_1, %c0_2] : memref<80x128xf32, #tpu.memory_space<vmem>>, vector<80x128xf32>
    %c0_3 = arith.constant 0 : index
    %c0_4 = arith.constant 0 : index
    %2 = vector.load %arg0[%c0_3, %c0_4] : memref<128x8xbf16, #tpu.memory_space<vmem>>, vector<128x8xbf16>
    %3 = vector.extract_strided_slice %0 {offsets = [0, 0], sizes = [8, 128], strides = [1, 1]} : vector<96x128xbf16> to vector<8x128xbf16>
    %cst = arith.constant dense<0.000000e+00> : vector<128x128xf32>
    %4 = tpu.matmul %2, %3, %cst {dimension_numbers = #tpu.dot_dimension_numbers<[1], [0], [0], [1], [0, 0, 1, 1], [], []>} : vector<128x8xbf16>, vector<8x128xbf16>, vector<128x128xf32> -> vector<128x128xf32>
    %5 = vector.extract_strided_slice %1 {offsets = [48, 0], sizes = [1, 128], strides = [1, 1]} : vector<80x128xf32> to vector<1x128xf32>
    %6 = vector.broadcast %5 : vector<1x128xf32> to vector<128x128xf32>
    %7 = arith.addf %4, %6 : vector<128x128xf32>
    %8 = vector.extract_strided_slice %0 {offsets = [16, 0], sizes = [32, 128], strides = [1, 1]} : vector<96x128xbf16> to vector<32x128xbf16>
    %cst_5 = arith.constant 0.000000e+00 : f32
    %9 = vector.broadcast %cst_5 : f32 to vector<8x32xf32>
    %cst_6 = arith.constant 0.000000e+00 : f32
    %10 = vector.broadcast %cst_6 : f32 to vector<8x32xf32>
    %11 = vector.extract_strided_slice %7 {offsets = [0, 0], sizes = [8, 128], strides = [1, 1]} : vector<128x128xf32> to vector<8x128xf32>
    %12 = arith.truncf %9 : vector<8x32xf32> to vector<8x32xbf16>
    %cst_7 = arith.constant dense<0.000000e+00> : vector<8x128xf32>
    %13 = tpu.matmul %12, %8, %cst_7 {dimension_numbers = #tpu.dot_dimension_numbers<[1], [0], [0], [1], [0, 0, 1, 1], [], []>} : vector<8x32xbf16>, vector<32x128xbf16>, vector<8x128xf32> -> vector<8x128xf32>
    %14 = arith.addf %11, %13 : vector<8x128xf32>
    %15 = arith.negf %14 : vector<8x128xf32>
    %16 = math.exp %15 : vector<8x128xf32>
    %cst_8 = arith.constant 1.000000e+00 : f32
    %17 = vector.broadcast %cst_8 : f32 to vector<8x128xf32>
    %18 = arith.addf %17, %16 : vector<8x128xf32>
    %19 = arith.divf %17, %18 : vector<8x128xf32>
    %20 = vector.extract_strided_slice %14 {offsets = [0, 64], sizes = [8, 32], strides = [1, 1]} : vector<8x128xf32> to vector<8x32xf32>
    %21 = math.tanh %20 : vector<8x32xf32>
    %22 = vector.extract_strided_slice %19 {offsets = [0, 32], sizes = [8, 32], strides = [1, 1]} : vector<8x128xf32> to vector<8x32xf32>
    %23 = arith.mulf %22, %10 : vector<8x32xf32>
    %24 = vector.extract_strided_slice %19 {offsets = [0, 0], sizes = [8, 32], strides = [1, 1]} : vector<8x128xf32> to vector<8x32xf32>
    %25 = arith.mulf %24, %21 : vector<8x32xf32>
    %26 = arith.addf %23, %25 : vector<8x32xf32>
    %27 = vector.extract_strided_slice %19 {offsets = [0, 96], sizes = [8, 32], strides = [1, 1]} : vector<8x128xf32> to vector<8x32xf32>
    %28 = math.tanh %26 : vector<8x32xf32>
    %29 = arith.mulf %27, %28 : vector<8x32xf32>
    %30 = vector.extract_strided_slice %7 {offsets = [8, 0], sizes = [8, 128], strides = [1, 1]} : vector<128x128xf32> to vector<8x128xf32>
    %31 = arith.truncf %29 : vector<8x32xf32> to vector<8x32xbf16>
    %cst_9 = arith.constant dense<0.000000e+00> : vector<8x128xf32>
    %32 = tpu.matmul %31, %8, %cst_9 {dimension_numbers = #tpu.dot_dimension_numbers<[1], [0], [0], [1], [0, 0, 1, 1], [], []>} : vector<8x32xbf16>, vector<32x128xbf16>, vector<8x128xf32> -> vector<8x128xf32>
    %33 = arith.addf %30, %32 : vector<8x128xf32>
    %34 = arith.negf %33 : vector<8x128xf32>
    %35 = math.exp %34 : vector<8x128xf32>
    %cst_10 = arith.constant 1.000000e+00 : f32
    %36 = vector.broadcast %cst_10 : f32 to vector<8x128xf32>
    %37 = arith.addf %36, %35 : vector<8x128xf32>
    %38 = arith.divf %36, %37 : vector<8x128xf32>
    %39 = vector.extract_strided_slice %33 {offsets = [0, 64], sizes = [8, 32], strides = [1, 1]} : vector<8x128xf32> to vector<8x32xf32>
    %40 = math.tanh %39 : vector<8x32xf32>
    %41 = vector.extract_strided_slice %38 {offsets = [0, 32], sizes = [8, 32], strides = [1, 1]} : vector<8x128xf32> to vector<8x32xf32>
    %42 = arith.mulf %41, %26 : vector<8x32xf32>
    %43 = vector.extract_strided_slice %38 {offsets = [0, 0], sizes = [8, 32], strides = [1, 1]} : vector<8x128xf32> to vector<8x32xf32>
    %44 = arith.mulf %43, %40 : vector<8x32xf32>
    %45 = arith.addf %42, %44 : vector<8x32xf32>
    %46 = vector.extract_strided_slice %38 {offsets = [0, 96], sizes = [8, 32], strides = [1, 1]} : vector<8x128xf32> to vector<8x32xf32>
    %47 = math.tanh %45 : vector<8x32xf32>
    %48 = arith.mulf %46, %47 : vector<8x32xf32>
    %49 = vector.extract_strided_slice %7 {offsets = [16, 0], sizes = [8, 128], strides = [1, 1]} : vector<128x128xf32> to vector<8x128xf32>
    %50 = arith.truncf %48 : vector<8x32xf32> to vector<8x32xbf16>
    %cst_11 = arith.constant dense<0.000000e+00> : vector<8x128xf32>
    %51 = tpu.matmul %50, %8, %cst_11 {dimension_numbers = #tpu.dot_dimension_numbers<[1], [0], [0], [1], [0, 0, 1, 1], [], []>} : vector<8x32xbf16>, vector<32x128xbf16>, vector<8x128xf32> -> vector<8x128xf32>
    %52 = arith.addf %49, %51 : vector<8x128xf32>
    %53 = arith.negf %52 : vector<8x128xf32>
    %54 = math.exp %53 : vector<8x128xf32>
    %cst_12 = arith.constant 1.000000e+00 : f32
    %55 = vector.broadcast %cst_12 : f32 to vector<8x128xf32>
    %56 = arith.addf %55, %54 : vector<8x128xf32>
    %57 = arith.divf %55, %56 : vector<8x128xf32>
    %58 = vector.extract_strided_slice %52 {offsets = [0, 64], sizes = [8, 32], strides = [1, 1]} : vector<8x128xf32> to vector<8x32xf32>
    %59 = math.tanh %58 : vector<8x32xf32>
    %60 = vector.extract_strided_slice %57 {offsets = [0, 32], sizes = [8, 32], strides = [1, 1]} : vector<8x128xf32> to vector<8x32xf32>
    %61 = arith.mulf %60, %45 : vector<8x32xf32>
    %62 = vector.extract_strided_slice %57 {offsets = [0, 0], sizes = [8, 32], strides = [1, 1]} : vector<8x128xf32> to vector<8x32xf32>
    %63 = arith.mulf %62, %59 : vector<8x32xf32>
    %64 = arith.addf %61, %63 : vector<8x32xf32>
    %65 = vector.extract_strided_slice %57 {offsets = [0, 96], sizes = [8, 32], strides = [1, 1]} : vector<8x128xf32> to vector<8x32xf32>
    %66 = math.tanh %64 : vector<8x32xf32>
    %67 = arith.mulf %65, %66 : vector<8x32xf32>
    %68 = vector.extract_strided_slice %7 {offsets = [24, 0], sizes = [8, 128], strides = [1, 1]} : vector<128x128xf32> to vector<8x128xf32>
    %69 = arith.truncf %67 : vector<8x32xf32> to vector<8x32xbf16>
    %cst_13 = arith.constant dense<0.000000e+00> : vector<8x128xf32>
    %70 = tpu.matmul %69, %8, %cst_13 {dimension_numbers = #tpu.dot_dimension_numbers<[1], [0], [0], [1], [0, 0, 1, 1], [], []>} : vector<8x32xbf16>, vector<32x128xbf16>, vector<8x128xf32> -> vector<8x128xf32>
    %71 = arith.addf %68, %70 : vector<8x128xf32>
    %72 = arith.negf %71 : vector<8x128xf32>
    %73 = math.exp %72 : vector<8x128xf32>
    %cst_14 = arith.constant 1.000000e+00 : f32
    %74 = vector.broadcast %cst_14 : f32 to vector<8x128xf32>
    %75 = arith.addf %74, %73 : vector<8x128xf32>
    %76 = arith.divf %74, %75 : vector<8x128xf32>
    %77 = vector.extract_strided_slice %71 {offsets = [0, 64], sizes = [8, 32], strides = [1, 1]} : vector<8x128xf32> to vector<8x32xf32>
    %78 = math.tanh %77 : vector<8x32xf32>
    %79 = vector.extract_strided_slice %76 {offsets = [0, 32], sizes = [8, 32], strides = [1, 1]} : vector<8x128xf32> to vector<8x32xf32>
    %80 = arith.mulf %79, %64 : vector<8x32xf32>
    %81 = vector.extract_strided_slice %76 {offsets = [0, 0], sizes = [8, 32], strides = [1, 1]} : vector<8x128xf32> to vector<8x32xf32>
    %82 = arith.mulf %81, %78 : vector<8x32xf32>
    %83 = arith.addf %80, %82 : vector<8x32xf32>
    %84 = vector.extract_strided_slice %76 {offsets = [0, 96], sizes = [8, 32], strides = [1, 1]} : vector<8x128xf32> to vector<8x32xf32>
    %85 = math.tanh %83 : vector<8x32xf32>
    %86 = arith.mulf %84, %85 : vector<8x32xf32>
    %87 = vector.extract_strided_slice %7 {offsets = [32, 0], sizes = [8, 128], strides = [1, 1]} : vector<128x128xf32> to vector<8x128xf32>
    %88 = arith.truncf %86 : vector<8x32xf32> to vector<8x32xbf16>
    %cst_15 = arith.constant dense<0.000000e+00> : vector<8x128xf32>
    %89 = tpu.matmul %88, %8, %cst_15 {dimension_numbers = #tpu.dot_dimension_numbers<[1], [0], [0], [1], [0, 0, 1, 1], [], []>} : vector<8x32xbf16>, vector<32x128xbf16>, vector<8x128xf32> -> vector<8x128xf32>
    %90 = arith.addf %87, %89 : vector<8x128xf32>
    %91 = arith.negf %90 : vector<8x128xf32>
    %92 = math.exp %91 : vector<8x128xf32>
    %cst_16 = arith.constant 1.000000e+00 : f32
    %93 = vector.broadcast %cst_16 : f32 to vector<8x128xf32>
    %94 = arith.addf %93, %92 : vector<8x128xf32>
    %95 = arith.divf %93, %94 : vector<8x128xf32>
    %96 = vector.extract_strided_slice %90 {offsets = [0, 64], sizes = [8, 32], strides = [1, 1]} : vector<8x128xf32> to vector<8x32xf32>
    %97 = math.tanh %96 : vector<8x32xf32>
    %98 = vector.extract_strided_slice %95 {offsets = [0, 32], sizes = [8, 32], strides = [1, 1]} : vector<8x128xf32> to vector<8x32xf32>
    %99 = arith.mulf %98, %83 : vector<8x32xf32>
    %100 = vector.extract_strided_slice %95 {offsets = [0, 0], sizes = [8, 32], strides = [1, 1]} : vector<8x128xf32> to vector<8x32xf32>
    %101 = arith.mulf %100, %97 : vector<8x32xf32>
    %102 = arith.addf %99, %101 : vector<8x32xf32>
    %103 = vector.extract_strided_slice %95 {offsets = [0, 96], sizes = [8, 32], strides = [1, 1]} : vector<8x128xf32> to vector<8x32xf32>
    %104 = math.tanh %102 : vector<8x32xf32>
    %105 = arith.mulf %103, %104 : vector<8x32xf32>
    %106 = vector.extract_strided_slice %7 {offsets = [40, 0], sizes = [8, 128], strides = [1, 1]} : vector<128x128xf32> to vector<8x128xf32>
    %107 = arith.truncf %105 : vector<8x32xf32> to vector<8x32xbf16>
    %cst_17 = arith.constant dense<0.000000e+00> : vector<8x128xf32>
    %108 = tpu.matmul %107, %8, %cst_17 {dimension_numbers = #tpu.dot_dimension_numbers<[1], [0], [0], [1], [0, 0, 1, 1], [], []>} : vector<8x32xbf16>, vector<32x128xbf16>, vector<8x128xf32> -> vector<8x128xf32>
    %109 = arith.addf %106, %108 : vector<8x128xf32>
    %110 = arith.negf %109 : vector<8x128xf32>
    %111 = math.exp %110 : vector<8x128xf32>
    %cst_18 = arith.constant 1.000000e+00 : f32
    %112 = vector.broadcast %cst_18 : f32 to vector<8x128xf32>
    %113 = arith.addf %112, %111 : vector<8x128xf32>
    %114 = arith.divf %112, %113 : vector<8x128xf32>
    %115 = vector.extract_strided_slice %109 {offsets = [0, 64], sizes = [8, 32], strides = [1, 1]} : vector<8x128xf32> to vector<8x32xf32>
    %116 = math.tanh %115 : vector<8x32xf32>
    %117 = vector.extract_strided_slice %114 {offsets = [0, 32], sizes = [8, 32], strides = [1, 1]} : vector<8x128xf32> to vector<8x32xf32>
    %118 = arith.mulf %117, %102 : vector<8x32xf32>
    %119 = vector.extract_strided_slice %114 {offsets = [0, 0], sizes = [8, 32], strides = [1, 1]} : vector<8x128xf32> to vector<8x32xf32>
    %120 = arith.mulf %119, %116 : vector<8x32xf32>
    %121 = arith.addf %118, %120 : vector<8x32xf32>
    %122 = vector.extract_strided_slice %114 {offsets = [0, 96], sizes = [8, 32], strides = [1, 1]} : vector<8x128xf32> to vector<8x32xf32>
    %123 = math.tanh %121 : vector<8x32xf32>
    %124 = arith.mulf %122, %123 : vector<8x32xf32>
    %125 = vector.extract_strided_slice %7 {offsets = [48, 0], sizes = [8, 128], strides = [1, 1]} : vector<128x128xf32> to vector<8x128xf32>
    %126 = arith.truncf %124 : vector<8x32xf32> to vector<8x32xbf16>
    %cst_19 = arith.constant dense<0.000000e+00> : vector<8x128xf32>
    %127 = tpu.matmul %126, %8, %cst_19 {dimension_numbers = #tpu.dot_dimension_numbers<[1], [0], [0], [1], [0, 0, 1, 1], [], []>} : vector<8x32xbf16>, vector<32x128xbf16>, vector<8x128xf32> -> vector<8x128xf32>
    %128 = arith.addf %125, %127 : vector<8x128xf32>
    %129 = arith.negf %128 : vector<8x128xf32>
    %130 = math.exp %129 : vector<8x128xf32>
    %cst_20 = arith.constant 1.000000e+00 : f32
    %131 = vector.broadcast %cst_20 : f32 to vector<8x128xf32>
    %132 = arith.addf %131, %130 : vector<8x128xf32>
    %133 = arith.divf %131, %132 : vector<8x128xf32>
    %134 = vector.extract_strided_slice %128 {offsets = [0, 64], sizes = [8, 32], strides = [1, 1]} : vector<8x128xf32> to vector<8x32xf32>
    %135 = math.tanh %134 : vector<8x32xf32>
    %136 = vector.extract_strided_slice %133 {offsets = [0, 32], sizes = [8, 32], strides = [1, 1]} : vector<8x128xf32> to vector<8x32xf32>
    %137 = arith.mulf %136, %121 : vector<8x32xf32>
    %138 = vector.extract_strided_slice %133 {offsets = [0, 0], sizes = [8, 32], strides = [1, 1]} : vector<8x128xf32> to vector<8x32xf32>
    %139 = arith.mulf %138, %135 : vector<8x32xf32>
    %140 = arith.addf %137, %139 : vector<8x32xf32>
    %141 = vector.extract_strided_slice %133 {offsets = [0, 96], sizes = [8, 32], strides = [1, 1]} : vector<8x128xf32> to vector<8x32xf32>
    %142 = math.tanh %140 : vector<8x32xf32>
    %143 = arith.mulf %141, %142 : vector<8x32xf32>
    %144 = vector.extract_strided_slice %7 {offsets = [56, 0], sizes = [8, 128], strides = [1, 1]} : vector<128x128xf32> to vector<8x128xf32>
    %145 = arith.truncf %143 : vector<8x32xf32> to vector<8x32xbf16>
    %cst_21 = arith.constant dense<0.000000e+00> : vector<8x128xf32>
    %146 = tpu.matmul %145, %8, %cst_21 {dimension_numbers = #tpu.dot_dimension_numbers<[1], [0], [0], [1], [0, 0, 1, 1], [], []>} : vector<8x32xbf16>, vector<32x128xbf16>, vector<8x128xf32> -> vector<8x128xf32>
    %147 = arith.addf %144, %146 : vector<8x128xf32>
    %148 = arith.negf %147 : vector<8x128xf32>
    %149 = math.exp %148 : vector<8x128xf32>
    %cst_22 = arith.constant 1.000000e+00 : f32
    %150 = vector.broadcast %cst_22 : f32 to vector<8x128xf32>
    %151 = arith.addf %150, %149 : vector<8x128xf32>
    %152 = arith.divf %150, %151 : vector<8x128xf32>
    %153 = vector.extract_strided_slice %147 {offsets = [0, 64], sizes = [8, 32], strides = [1, 1]} : vector<8x128xf32> to vector<8x32xf32>
    %154 = math.tanh %153 : vector<8x32xf32>
    %155 = vector.extract_strided_slice %152 {offsets = [0, 32], sizes = [8, 32], strides = [1, 1]} : vector<8x128xf32> to vector<8x32xf32>
    %156 = arith.mulf %155, %140 : vector<8x32xf32>
    %157 = vector.extract_strided_slice %152 {offsets = [0, 0], sizes = [8, 32], strides = [1, 1]} : vector<8x128xf32> to vector<8x32xf32>
    %158 = arith.mulf %157, %154 : vector<8x32xf32>
    %159 = arith.addf %156, %158 : vector<8x32xf32>
    %160 = vector.extract_strided_slice %152 {offsets = [0, 96], sizes = [8, 32], strides = [1, 1]} : vector<8x128xf32> to vector<8x32xf32>
    %161 = math.tanh %159 : vector<8x32xf32>
    %162 = arith.mulf %160, %161 : vector<8x32xf32>
    %163 = vector.extract_strided_slice %7 {offsets = [64, 0], sizes = [8, 128], strides = [1, 1]} : vector<128x128xf32> to vector<8x128xf32>
    %164 = arith.truncf %162 : vector<8x32xf32> to vector<8x32xbf16>
    %cst_23 = arith.constant dense<0.000000e+00> : vector<8x128xf32>
    %165 = tpu.matmul %164, %8, %cst_23 {dimension_numbers = #tpu.dot_dimension_numbers<[1], [0], [0], [1], [0, 0, 1, 1], [], []>} : vector<8x32xbf16>, vector<32x128xbf16>, vector<8x128xf32> -> vector<8x128xf32>
    %166 = arith.addf %163, %165 : vector<8x128xf32>
    %167 = arith.negf %166 : vector<8x128xf32>
    %168 = math.exp %167 : vector<8x128xf32>
    %cst_24 = arith.constant 1.000000e+00 : f32
    %169 = vector.broadcast %cst_24 : f32 to vector<8x128xf32>
    %170 = arith.addf %169, %168 : vector<8x128xf32>
    %171 = arith.divf %169, %170 : vector<8x128xf32>
    %172 = vector.extract_strided_slice %166 {offsets = [0, 64], sizes = [8, 32], strides = [1, 1]} : vector<8x128xf32> to vector<8x32xf32>
    %173 = math.tanh %172 : vector<8x32xf32>
    %174 = vector.extract_strided_slice %171 {offsets = [0, 32], sizes = [8, 32], strides = [1, 1]} : vector<8x128xf32> to vector<8x32xf32>
    %175 = arith.mulf %174, %159 : vector<8x32xf32>
    %176 = vector.extract_strided_slice %171 {offsets = [0, 0], sizes = [8, 32], strides = [1, 1]} : vector<8x128xf32> to vector<8x32xf32>
    %177 = arith.mulf %176, %173 : vector<8x32xf32>
    %178 = arith.addf %175, %177 : vector<8x32xf32>
    %179 = vector.extract_strided_slice %171 {offsets = [0, 96], sizes = [8, 32], strides = [1, 1]} : vector<8x128xf32> to vector<8x32xf32>
    %180 = math.tanh %178 : vector<8x32xf32>
    %181 = arith.mulf %179, %180 : vector<8x32xf32>
    %182 = vector.extract_strided_slice %7 {offsets = [72, 0], sizes = [8, 128], strides = [1, 1]} : vector<128x128xf32> to vector<8x128xf32>
    %183 = arith.truncf %181 : vector<8x32xf32> to vector<8x32xbf16>
    %cst_25 = arith.constant dense<0.000000e+00> : vector<8x128xf32>
    %184 = tpu.matmul %183, %8, %cst_25 {dimension_numbers = #tpu.dot_dimension_numbers<[1], [0], [0], [1], [0, 0, 1, 1], [], []>} : vector<8x32xbf16>, vector<32x128xbf16>, vector<8x128xf32> -> vector<8x128xf32>
    %185 = arith.addf %182, %184 : vector<8x128xf32>
    %186 = arith.negf %185 : vector<8x128xf32>
    %187 = math.exp %186 : vector<8x128xf32>
    %cst_26 = arith.constant 1.000000e+00 : f32
    %188 = vector.broadcast %cst_26 : f32 to vector<8x128xf32>
    %189 = arith.addf %188, %187 : vector<8x128xf32>
    %190 = arith.divf %188, %189 : vector<8x128xf32>
    %191 = vector.extract_strided_slice %185 {offsets = [0, 64], sizes = [8, 32], strides = [1, 1]} : vector<8x128xf32> to vector<8x32xf32>
    %192 = math.tanh %191 : vector<8x32xf32>
    %193 = vector.extract_strided_slice %190 {offsets = [0, 32], sizes = [8, 32], strides = [1, 1]} : vector<8x128xf32> to vector<8x32xf32>
    %194 = arith.mulf %193, %178 : vector<8x32xf32>
    %195 = vector.extract_strided_slice %190 {offsets = [0, 0], sizes = [8, 32], strides = [1, 1]} : vector<8x128xf32> to vector<8x32xf32>
    %196 = arith.mulf %195, %192 : vector<8x32xf32>
    %197 = arith.addf %194, %196 : vector<8x32xf32>
    %198 = vector.extract_strided_slice %190 {offsets = [0, 96], sizes = [8, 32], strides = [1, 1]} : vector<8x128xf32> to vector<8x32xf32>
    %199 = math.tanh %197 : vector<8x32xf32>
    %200 = arith.mulf %198, %199 : vector<8x32xf32>
    %201 = vector.extract_strided_slice %7 {offsets = [80, 0], sizes = [8, 128], strides = [1, 1]} : vector<128x128xf32> to vector<8x128xf32>
    %202 = arith.truncf %200 : vector<8x32xf32> to vector<8x32xbf16>
    %cst_27 = arith.constant dense<0.000000e+00> : vector<8x128xf32>
    %203 = tpu.matmul %202, %8, %cst_27 {dimension_numbers = #tpu.dot_dimension_numbers<[1], [0], [0], [1], [0, 0, 1, 1], [], []>} : vector<8x32xbf16>, vector<32x128xbf16>, vector<8x128xf32> -> vector<8x128xf32>
    %204 = arith.addf %201, %203 : vector<8x128xf32>
    %205 = arith.negf %204 : vector<8x128xf32>
    %206 = math.exp %205 : vector<8x128xf32>
    %cst_28 = arith.constant 1.000000e+00 : f32
    %207 = vector.broadcast %cst_28 : f32 to vector<8x128xf32>
    %208 = arith.addf %207, %206 : vector<8x128xf32>
    %209 = arith.divf %207, %208 : vector<8x128xf32>
    %210 = vector.extract_strided_slice %204 {offsets = [0, 64], sizes = [8, 32], strides = [1, 1]} : vector<8x128xf32> to vector<8x32xf32>
    %211 = math.tanh %210 : vector<8x32xf32>
    %212 = vector.extract_strided_slice %209 {offsets = [0, 32], sizes = [8, 32], strides = [1, 1]} : vector<8x128xf32> to vector<8x32xf32>
    %213 = arith.mulf %212, %197 : vector<8x32xf32>
    %214 = vector.extract_strided_slice %209 {offsets = [0, 0], sizes = [8, 32], strides = [1, 1]} : vector<8x128xf32> to vector<8x32xf32>
    %215 = arith.mulf %214, %211 : vector<8x32xf32>
    %216 = arith.addf %213, %215 : vector<8x32xf32>
    %217 = vector.extract_strided_slice %209 {offsets = [0, 96], sizes = [8, 32], strides = [1, 1]} : vector<8x128xf32> to vector<8x32xf32>
    %218 = math.tanh %216 : vector<8x32xf32>
    %219 = arith.mulf %217, %218 : vector<8x32xf32>
    %220 = vector.extract_strided_slice %7 {offsets = [88, 0], sizes = [8, 128], strides = [1, 1]} : vector<128x128xf32> to vector<8x128xf32>
    %221 = arith.truncf %219 : vector<8x32xf32> to vector<8x32xbf16>
    %cst_29 = arith.constant dense<0.000000e+00> : vector<8x128xf32>
    %222 = tpu.matmul %221, %8, %cst_29 {dimension_numbers = #tpu.dot_dimension_numbers<[1], [0], [0], [1], [0, 0, 1, 1], [], []>} : vector<8x32xbf16>, vector<32x128xbf16>, vector<8x128xf32> -> vector<8x128xf32>
    %223 = arith.addf %220, %222 : vector<8x128xf32>
    %224 = arith.negf %223 : vector<8x128xf32>
    %225 = math.exp %224 : vector<8x128xf32>
    %cst_30 = arith.constant 1.000000e+00 : f32
    %226 = vector.broadcast %cst_30 : f32 to vector<8x128xf32>
    %227 = arith.addf %226, %225 : vector<8x128xf32>
    %228 = arith.divf %226, %227 : vector<8x128xf32>
    %229 = vector.extract_strided_slice %223 {offsets = [0, 64], sizes = [8, 32], strides = [1, 1]} : vector<8x128xf32> to vector<8x32xf32>
    %230 = math.tanh %229 : vector<8x32xf32>
    %231 = vector.extract_strided_slice %228 {offsets = [0, 32], sizes = [8, 32], strides = [1, 1]} : vector<8x128xf32> to vector<8x32xf32>
    %232 = arith.mulf %231, %216 : vector<8x32xf32>
    %233 = vector.extract_strided_slice %228 {offsets = [0, 0], sizes = [8, 32], strides = [1, 1]} : vector<8x128xf32> to vector<8x32xf32>
    %234 = arith.mulf %233, %230 : vector<8x32xf32>
    %235 = arith.addf %232, %234 : vector<8x32xf32>
    %236 = vector.extract_strided_slice %228 {offsets = [0, 96], sizes = [8, 32], strides = [1, 1]} : vector<8x128xf32> to vector<8x32xf32>
    %237 = math.tanh %235 : vector<8x32xf32>
    %238 = arith.mulf %236, %237 : vector<8x32xf32>
    %239 = vector.extract_strided_slice %7 {offsets = [96, 0], sizes = [8, 128], strides = [1, 1]} : vector<128x128xf32> to vector<8x128xf32>
    %240 = arith.truncf %238 : vector<8x32xf32> to vector<8x32xbf16>
    %cst_31 = arith.constant dense<0.000000e+00> : vector<8x128xf32>
    %241 = tpu.matmul %240, %8, %cst_31 {dimension_numbers = #tpu.dot_dimension_numbers<[1], [0], [0], [1], [0, 0, 1, 1], [], []>} : vector<8x32xbf16>, vector<32x128xbf16>, vector<8x128xf32> -> vector<8x128xf32>
    %242 = arith.addf %239, %241 : vector<8x128xf32>
    %243 = arith.negf %242 : vector<8x128xf32>
    %244 = math.exp %243 : vector<8x128xf32>
    %cst_32 = arith.constant 1.000000e+00 : f32
    %245 = vector.broadcast %cst_32 : f32 to vector<8x128xf32>
    %246 = arith.addf %245, %244 : vector<8x128xf32>
    %247 = arith.divf %245, %246 : vector<8x128xf32>
    %248 = vector.extract_strided_slice %242 {offsets = [0, 64], sizes = [8, 32], strides = [1, 1]} : vector<8x128xf32> to vector<8x32xf32>
    %249 = math.tanh %248 : vector<8x32xf32>
    %250 = vector.extract_strided_slice %247 {offsets = [0, 32], sizes = [8, 32], strides = [1, 1]} : vector<8x128xf32> to vector<8x32xf32>
    %251 = arith.mulf %250, %235 : vector<8x32xf32>
    %252 = vector.extract_strided_slice %247 {offsets = [0, 0], sizes = [8, 32], strides = [1, 1]} : vector<8x128xf32> to vector<8x32xf32>
    %253 = arith.mulf %252, %249 : vector<8x32xf32>
    %254 = arith.addf %251, %253 : vector<8x32xf32>
    %255 = vector.extract_strided_slice %247 {offsets = [0, 96], sizes = [8, 32], strides = [1, 1]} : vector<8x128xf32> to vector<8x32xf32>
    %256 = math.tanh %254 : vector<8x32xf32>
    %257 = arith.mulf %255, %256 : vector<8x32xf32>
    %258 = vector.extract_strided_slice %7 {offsets = [104, 0], sizes = [8, 128], strides = [1, 1]} : vector<128x128xf32> to vector<8x128xf32>
    %259 = arith.truncf %257 : vector<8x32xf32> to vector<8x32xbf16>
    %cst_33 = arith.constant dense<0.000000e+00> : vector<8x128xf32>
    %260 = tpu.matmul %259, %8, %cst_33 {dimension_numbers = #tpu.dot_dimension_numbers<[1], [0], [0], [1], [0, 0, 1, 1], [], []>} : vector<8x32xbf16>, vector<32x128xbf16>, vector<8x128xf32> -> vector<8x128xf32>
    %261 = arith.addf %258, %260 : vector<8x128xf32>
    %262 = arith.negf %261 : vector<8x128xf32>
    %263 = math.exp %262 : vector<8x128xf32>
    %cst_34 = arith.constant 1.000000e+00 : f32
    %264 = vector.broadcast %cst_34 : f32 to vector<8x128xf32>
    %265 = arith.addf %264, %263 : vector<8x128xf32>
    %266 = arith.divf %264, %265 : vector<8x128xf32>
    %267 = vector.extract_strided_slice %261 {offsets = [0, 64], sizes = [8, 32], strides = [1, 1]} : vector<8x128xf32> to vector<8x32xf32>
    %268 = math.tanh %267 : vector<8x32xf32>
    %269 = vector.extract_strided_slice %266 {offsets = [0, 32], sizes = [8, 32], strides = [1, 1]} : vector<8x128xf32> to vector<8x32xf32>
    %270 = arith.mulf %269, %254 : vector<8x32xf32>
    %271 = vector.extract_strided_slice %266 {offsets = [0, 0], sizes = [8, 32], strides = [1, 1]} : vector<8x128xf32> to vector<8x32xf32>
    %272 = arith.mulf %271, %268 : vector<8x32xf32>
    %273 = arith.addf %270, %272 : vector<8x32xf32>
    %274 = vector.extract_strided_slice %266 {offsets = [0, 96], sizes = [8, 32], strides = [1, 1]} : vector<8x128xf32> to vector<8x32xf32>
    %275 = math.tanh %273 : vector<8x32xf32>
    %276 = arith.mulf %274, %275 : vector<8x32xf32>
    %277 = vector.extract_strided_slice %7 {offsets = [112, 0], sizes = [8, 128], strides = [1, 1]} : vector<128x128xf32> to vector<8x128xf32>
    %278 = arith.truncf %276 : vector<8x32xf32> to vector<8x32xbf16>
    %cst_35 = arith.constant dense<0.000000e+00> : vector<8x128xf32>
    %279 = tpu.matmul %278, %8, %cst_35 {dimension_numbers = #tpu.dot_dimension_numbers<[1], [0], [0], [1], [0, 0, 1, 1], [], []>} : vector<8x32xbf16>, vector<32x128xbf16>, vector<8x128xf32> -> vector<8x128xf32>
    %280 = arith.addf %277, %279 : vector<8x128xf32>
    %281 = arith.negf %280 : vector<8x128xf32>
    %282 = math.exp %281 : vector<8x128xf32>
    %cst_36 = arith.constant 1.000000e+00 : f32
    %283 = vector.broadcast %cst_36 : f32 to vector<8x128xf32>
    %284 = arith.addf %283, %282 : vector<8x128xf32>
    %285 = arith.divf %283, %284 : vector<8x128xf32>
    %286 = vector.extract_strided_slice %280 {offsets = [0, 64], sizes = [8, 32], strides = [1, 1]} : vector<8x128xf32> to vector<8x32xf32>
    %287 = math.tanh %286 : vector<8x32xf32>
    %288 = vector.extract_strided_slice %285 {offsets = [0, 32], sizes = [8, 32], strides = [1, 1]} : vector<8x128xf32> to vector<8x32xf32>
    %289 = arith.mulf %288, %273 : vector<8x32xf32>
    %290 = vector.extract_strided_slice %285 {offsets = [0, 0], sizes = [8, 32], strides = [1, 1]} : vector<8x128xf32> to vector<8x32xf32>
    %291 = arith.mulf %290, %287 : vector<8x32xf32>
    %292 = arith.addf %289, %291 : vector<8x32xf32>
    %293 = vector.extract_strided_slice %285 {offsets = [0, 96], sizes = [8, 32], strides = [1, 1]} : vector<8x128xf32> to vector<8x32xf32>
    %294 = math.tanh %292 : vector<8x32xf32>
    %295 = arith.mulf %293, %294 : vector<8x32xf32>
    %296 = vector.extract_strided_slice %7 {offsets = [120, 0], sizes = [8, 128], strides = [1, 1]} : vector<128x128xf32> to vector<8x128xf32>
    %297 = arith.truncf %295 : vector<8x32xf32> to vector<8x32xbf16>
    %cst_37 = arith.constant dense<0.000000e+00> : vector<8x128xf32>
    %298 = tpu.matmul %297, %8, %cst_37 {dimension_numbers = #tpu.dot_dimension_numbers<[1], [0], [0], [1], [0, 0, 1, 1], [], []>} : vector<8x32xbf16>, vector<32x128xbf16>, vector<8x128xf32> -> vector<8x128xf32>
    %299 = arith.addf %296, %298 : vector<8x128xf32>
    %300 = arith.negf %299 : vector<8x128xf32>
    %301 = math.exp %300 : vector<8x128xf32>
    %cst_38 = arith.constant 1.000000e+00 : f32
    %302 = vector.broadcast %cst_38 : f32 to vector<8x128xf32>
    %303 = arith.addf %302, %301 : vector<8x128xf32>
    %304 = arith.divf %302, %303 : vector<8x128xf32>
    %305 = vector.extract_strided_slice %299 {offsets = [0, 64], sizes = [8, 32], strides = [1, 1]} : vector<8x128xf32> to vector<8x32xf32>
    %306 = math.tanh %305 : vector<8x32xf32>
    %307 = vector.extract_strided_slice %304 {offsets = [0, 32], sizes = [8, 32], strides = [1, 1]} : vector<8x128xf32> to vector<8x32xf32>
    %308 = arith.mulf %307, %292 : vector<8x32xf32>
    %309 = vector.extract_strided_slice %304 {offsets = [0, 0], sizes = [8, 32], strides = [1, 1]} : vector<8x128xf32> to vector<8x32xf32>
    %310 = arith.mulf %309, %306 : vector<8x32xf32>
    %311 = arith.addf %308, %310 : vector<8x32xf32>
    %312 = vector.extract_strided_slice %304 {offsets = [0, 96], sizes = [8, 32], strides = [1, 1]} : vector<8x128xf32> to vector<8x32xf32>
    %313 = math.tanh %311 : vector<8x32xf32>
    %314 = arith.mulf %312, %313 : vector<8x32xf32>
    %315 = vector.extract_strided_slice %1 {offsets = [0, 0], sizes = [32, 8], strides = [1, 1]} : vector<80x128xf32> to vector<32x8xf32>
    %cst_39 = arith.constant dense<0.000000e+00> : vector<8x8xf32>
    %316 = tpu.matmul %314, %315, %cst_39 {dimension_numbers = #tpu.dot_dimension_numbers<[1], [0], [0], [1], [0, 0, 1, 1], [], []>} : vector<8x32xf32>, vector<32x8xf32>, vector<8x8xf32> -> vector<8x8xf32>
    %317 = vector.extract_strided_slice %1 {offsets = [56, 0], sizes = [1, 8], strides = [1, 1]} : vector<80x128xf32> to vector<1x8xf32>
    %318 = vector.broadcast %317 : vector<1x8xf32> to vector<8x8xf32>
    %319 = arith.addf %316, %318 : vector<8x8xf32>
    %320 = vector.extract_strided_slice %319 {offsets = [0, 0], sizes = [8, 4], strides = [1, 1]} : vector<8x8xf32> to vector<8x4xf32>
    %321 = vector.extract_strided_slice %319 {offsets = [0, 4], sizes = [8, 4], strides = [1, 1]} : vector<8x8xf32> to vector<8x4xf32>
    %cst_40 = arith.constant 5.000000e-01 : f32
    %322 = vector.broadcast %cst_40 : f32 to vector<8x4xf32>
    %323 = arith.mulf %322, %321 : vector<8x4xf32>
    %324 = math.exp %323 : vector<8x4xf32>
    %c0_41 = arith.constant 0 : index
    %c0_42 = arith.constant 0 : index
    %325 = vector.load %arg1[%c0_41, %c0_42] : memref<8x4xf32, #tpu.memory_space<vmem>>, vector<8x4xf32>
    %326 = arith.mulf %325, %324 : vector<8x4xf32>
    %327 = arith.addf %320, %326 : vector<8x4xf32>
    %328 = arith.truncf %327 : vector<8x4xf32> to vector<8x4xbf16>
    %329 = vector.extract_strided_slice %0 {offsets = [64, 0], sizes = [4, 64], strides = [1, 1]} : vector<96x128xbf16> to vector<4x64xbf16>
    %cst_43 = arith.constant dense<0.000000e+00> : vector<8x64xf32>
    %330 = tpu.matmul %328, %329, %cst_43 {dimension_numbers = #tpu.dot_dimension_numbers<[1], [0], [0], [1], [0, 0, 1, 1], [], []>} : vector<8x4xbf16>, vector<4x64xbf16>, vector<8x64xf32> -> vector<8x64xf32>
    %331 = vector.extract_strided_slice %1 {offsets = [64, 0], sizes = [1, 64], strides = [1, 1]} : vector<80x128xf32> to vector<1x64xf32>
    %332 = vector.broadcast %331 : vector<1x64xf32> to vector<8x64xf32>
    %333 = arith.addf %330, %332 : vector<8x64xf32>
    %334 = vector.extract_strided_slice %2 {offsets = [0, 0], sizes = [64, 8], strides = [1, 1]} : vector<128x8xbf16> to vector<64x8xbf16>
    %335 = vector.extract_strided_slice %0 {offsets = [48, 0], sizes = [8, 64], strides = [1, 1]} : vector<96x128xbf16> to vector<8x64xbf16>
    %cst_44 = arith.constant dense<0.000000e+00> : vector<64x64xf32>
    %336 = tpu.matmul %334, %335, %cst_44 {dimension_numbers = #tpu.dot_dimension_numbers<[1], [0], [0], [1], [0, 0, 1, 1], [], []>} : vector<64x8xbf16>, vector<8x64xbf16>, vector<64x64xf32> -> vector<64x64xf32>
    %337 = vector.extract_strided_slice %0 {offsets = [80, 0], sizes = [16, 64], strides = [1, 1]} : vector<96x128xbf16> to vector<16x64xbf16>
    %cst_45 = arith.constant 0.000000e+00 : f32
    %338 = vector.broadcast %cst_45 : f32 to vector<8x16xf32>
    %cst_46 = arith.constant 0.000000e+00 : f32
    %339 = vector.broadcast %cst_46 : f32 to vector<8x16xf32>
    %340 = vector.extract_strided_slice %336 {offsets = [0, 0], sizes = [8, 64], strides = [1, 1]} : vector<64x64xf32> to vector<8x64xf32>
    %341 = arith.addf %340, %333 : vector<8x64xf32>
    %342 = arith.truncf %338 : vector<8x16xf32> to vector<8x16xbf16>
    %cst_47 = arith.constant dense<0.000000e+00> : vector<8x64xf32>
    %343 = tpu.matmul %342, %337, %cst_47 {dimension_numbers = #tpu.dot_dimension_numbers<[1], [0], [0], [1], [0, 0, 1, 1], [], []>} : vector<8x16xbf16>, vector<16x64xbf16>, vector<8x64xf32> -> vector<8x64xf32>
    %344 = arith.addf %341, %343 : vector<8x64xf32>
    %345 = arith.negf %344 : vector<8x64xf32>
    %346 = math.exp %345 : vector<8x64xf32>
    %cst_48 = arith.constant 1.000000e+00 : f32
    %347 = vector.broadcast %cst_48 : f32 to vector<8x64xf32>
    %348 = arith.addf %347, %346 : vector<8x64xf32>
    %349 = arith.divf %347, %348 : vector<8x64xf32>
    %350 = vector.extract_strided_slice %344 {offsets = [0, 32], sizes = [8, 16], strides = [1, 1]} : vector<8x64xf32> to vector<8x16xf32>
    %351 = math.tanh %350 : vector<8x16xf32>
    %352 = vector.extract_strided_slice %349 {offsets = [0, 16], sizes = [8, 16], strides = [1, 1]} : vector<8x64xf32> to vector<8x16xf32>
    %353 = arith.mulf %352, %339 : vector<8x16xf32>
    %354 = vector.extract_strided_slice %349 {offsets = [0, 0], sizes = [8, 16], strides = [1, 1]} : vector<8x64xf32> to vector<8x16xf32>
    %355 = arith.mulf %354, %351 : vector<8x16xf32>
    %356 = arith.addf %353, %355 : vector<8x16xf32>
    %357 = vector.extract_strided_slice %349 {offsets = [0, 48], sizes = [8, 16], strides = [1, 1]} : vector<8x64xf32> to vector<8x16xf32>
    %358 = math.tanh %356 : vector<8x16xf32>
    %359 = arith.mulf %357, %358 : vector<8x16xf32>
    %360 = vector.extract_strided_slice %336 {offsets = [8, 0], sizes = [8, 64], strides = [1, 1]} : vector<64x64xf32> to vector<8x64xf32>
    %361 = arith.addf %360, %333 : vector<8x64xf32>
    %362 = arith.truncf %359 : vector<8x16xf32> to vector<8x16xbf16>
    %cst_49 = arith.constant dense<0.000000e+00> : vector<8x64xf32>
    %363 = tpu.matmul %362, %337, %cst_49 {dimension_numbers = #tpu.dot_dimension_numbers<[1], [0], [0], [1], [0, 0, 1, 1], [], []>} : vector<8x16xbf16>, vector<16x64xbf16>, vector<8x64xf32> -> vector<8x64xf32>
    %364 = arith.addf %361, %363 : vector<8x64xf32>
    %365 = arith.negf %364 : vector<8x64xf32>
    %366 = math.exp %365 : vector<8x64xf32>
    %cst_50 = arith.constant 1.000000e+00 : f32
    %367 = vector.broadcast %cst_50 : f32 to vector<8x64xf32>
    %368 = arith.addf %367, %366 : vector<8x64xf32>
    %369 = arith.divf %367, %368 : vector<8x64xf32>
    %370 = vector.extract_strided_slice %364 {offsets = [0, 32], sizes = [8, 16], strides = [1, 1]} : vector<8x64xf32> to vector<8x16xf32>
    %371 = math.tanh %370 : vector<8x16xf32>
    %372 = vector.extract_strided_slice %369 {offsets = [0, 16], sizes = [8, 16], strides = [1, 1]} : vector<8x64xf32> to vector<8x16xf32>
    %373 = arith.mulf %372, %356 : vector<8x16xf32>
    %374 = vector.extract_strided_slice %369 {offsets = [0, 0], sizes = [8, 16], strides = [1, 1]} : vector<8x64xf32> to vector<8x16xf32>
    %375 = arith.mulf %374, %371 : vector<8x16xf32>
    %376 = arith.addf %373, %375 : vector<8x16xf32>
    %377 = vector.extract_strided_slice %369 {offsets = [0, 48], sizes = [8, 16], strides = [1, 1]} : vector<8x64xf32> to vector<8x16xf32>
    %378 = math.tanh %376 : vector<8x16xf32>
    %379 = arith.mulf %377, %378 : vector<8x16xf32>
    %380 = vector.extract_strided_slice %336 {offsets = [16, 0], sizes = [8, 64], strides = [1, 1]} : vector<64x64xf32> to vector<8x64xf32>
    %381 = arith.addf %380, %333 : vector<8x64xf32>
    %382 = arith.truncf %379 : vector<8x16xf32> to vector<8x16xbf16>
    %cst_51 = arith.constant dense<0.000000e+00> : vector<8x64xf32>
    %383 = tpu.matmul %382, %337, %cst_51 {dimension_numbers = #tpu.dot_dimension_numbers<[1], [0], [0], [1], [0, 0, 1, 1], [], []>} : vector<8x16xbf16>, vector<16x64xbf16>, vector<8x64xf32> -> vector<8x64xf32>
    %384 = arith.addf %381, %383 : vector<8x64xf32>
    %385 = arith.negf %384 : vector<8x64xf32>
    %386 = math.exp %385 : vector<8x64xf32>
    %cst_52 = arith.constant 1.000000e+00 : f32
    %387 = vector.broadcast %cst_52 : f32 to vector<8x64xf32>
    %388 = arith.addf %387, %386 : vector<8x64xf32>
    %389 = arith.divf %387, %388 : vector<8x64xf32>
    %390 = vector.extract_strided_slice %384 {offsets = [0, 32], sizes = [8, 16], strides = [1, 1]} : vector<8x64xf32> to vector<8x16xf32>
    %391 = math.tanh %390 : vector<8x16xf32>
    %392 = vector.extract_strided_slice %389 {offsets = [0, 16], sizes = [8, 16], strides = [1, 1]} : vector<8x64xf32> to vector<8x16xf32>
    %393 = arith.mulf %392, %376 : vector<8x16xf32>
    %394 = vector.extract_strided_slice %389 {offsets = [0, 0], sizes = [8, 16], strides = [1, 1]} : vector<8x64xf32> to vector<8x16xf32>
    %395 = arith.mulf %394, %391 : vector<8x16xf32>
    %396 = arith.addf %393, %395 : vector<8x16xf32>
    %397 = vector.extract_strided_slice %389 {offsets = [0, 48], sizes = [8, 16], strides = [1, 1]} : vector<8x64xf32> to vector<8x16xf32>
    %398 = math.tanh %396 : vector<8x16xf32>
    %399 = arith.mulf %397, %398 : vector<8x16xf32>
    %400 = vector.extract_strided_slice %336 {offsets = [24, 0], sizes = [8, 64], strides = [1, 1]} : vector<64x64xf32> to vector<8x64xf32>
    %401 = arith.addf %400, %333 : vector<8x64xf32>
    %402 = arith.truncf %399 : vector<8x16xf32> to vector<8x16xbf16>
    %cst_53 = arith.constant dense<0.000000e+00> : vector<8x64xf32>
    %403 = tpu.matmul %402, %337, %cst_53 {dimension_numbers = #tpu.dot_dimension_numbers<[1], [0], [0], [1], [0, 0, 1, 1], [], []>} : vector<8x16xbf16>, vector<16x64xbf16>, vector<8x64xf32> -> vector<8x64xf32>
    %404 = arith.addf %401, %403 : vector<8x64xf32>
    %405 = arith.negf %404 : vector<8x64xf32>
    %406 = math.exp %405 : vector<8x64xf32>
    %cst_54 = arith.constant 1.000000e+00 : f32
    %407 = vector.broadcast %cst_54 : f32 to vector<8x64xf32>
    %408 = arith.addf %407, %406 : vector<8x64xf32>
    %409 = arith.divf %407, %408 : vector<8x64xf32>
    %410 = vector.extract_strided_slice %404 {offsets = [0, 32], sizes = [8, 16], strides = [1, 1]} : vector<8x64xf32> to vector<8x16xf32>
    %411 = math.tanh %410 : vector<8x16xf32>
    %412 = vector.extract_strided_slice %409 {offsets = [0, 16], sizes = [8, 16], strides = [1, 1]} : vector<8x64xf32> to vector<8x16xf32>
    %413 = arith.mulf %412, %396 : vector<8x16xf32>
    %414 = vector.extract_strided_slice %409 {offsets = [0, 0], sizes = [8, 16], strides = [1, 1]} : vector<8x64xf32> to vector<8x16xf32>
    %415 = arith.mulf %414, %411 : vector<8x16xf32>
    %416 = arith.addf %413, %415 : vector<8x16xf32>
    %417 = vector.extract_strided_slice %409 {offsets = [0, 48], sizes = [8, 16], strides = [1, 1]} : vector<8x64xf32> to vector<8x16xf32>
    %418 = math.tanh %416 : vector<8x16xf32>
    %419 = arith.mulf %417, %418 : vector<8x16xf32>
    %420 = vector.extract_strided_slice %336 {offsets = [32, 0], sizes = [8, 64], strides = [1, 1]} : vector<64x64xf32> to vector<8x64xf32>
    %421 = arith.addf %420, %333 : vector<8x64xf32>
    %422 = arith.truncf %419 : vector<8x16xf32> to vector<8x16xbf16>
    %cst_55 = arith.constant dense<0.000000e+00> : vector<8x64xf32>
    %423 = tpu.matmul %422, %337, %cst_55 {dimension_numbers = #tpu.dot_dimension_numbers<[1], [0], [0], [1], [0, 0, 1, 1], [], []>} : vector<8x16xbf16>, vector<16x64xbf16>, vector<8x64xf32> -> vector<8x64xf32>
    %424 = arith.addf %421, %423 : vector<8x64xf32>
    %425 = arith.negf %424 : vector<8x64xf32>
    %426 = math.exp %425 : vector<8x64xf32>
    %cst_56 = arith.constant 1.000000e+00 : f32
    %427 = vector.broadcast %cst_56 : f32 to vector<8x64xf32>
    %428 = arith.addf %427, %426 : vector<8x64xf32>
    %429 = arith.divf %427, %428 : vector<8x64xf32>
    %430 = vector.extract_strided_slice %424 {offsets = [0, 32], sizes = [8, 16], strides = [1, 1]} : vector<8x64xf32> to vector<8x16xf32>
    %431 = math.tanh %430 : vector<8x16xf32>
    %432 = vector.extract_strided_slice %429 {offsets = [0, 16], sizes = [8, 16], strides = [1, 1]} : vector<8x64xf32> to vector<8x16xf32>
    %433 = arith.mulf %432, %416 : vector<8x16xf32>
    %434 = vector.extract_strided_slice %429 {offsets = [0, 0], sizes = [8, 16], strides = [1, 1]} : vector<8x64xf32> to vector<8x16xf32>
    %435 = arith.mulf %434, %431 : vector<8x16xf32>
    %436 = arith.addf %433, %435 : vector<8x16xf32>
    %437 = vector.extract_strided_slice %429 {offsets = [0, 48], sizes = [8, 16], strides = [1, 1]} : vector<8x64xf32> to vector<8x16xf32>
    %438 = math.tanh %436 : vector<8x16xf32>
    %439 = arith.mulf %437, %438 : vector<8x16xf32>
    %440 = vector.extract_strided_slice %336 {offsets = [40, 0], sizes = [8, 64], strides = [1, 1]} : vector<64x64xf32> to vector<8x64xf32>
    %441 = arith.addf %440, %333 : vector<8x64xf32>
    %442 = arith.truncf %439 : vector<8x16xf32> to vector<8x16xbf16>
    %cst_57 = arith.constant dense<0.000000e+00> : vector<8x64xf32>
    %443 = tpu.matmul %442, %337, %cst_57 {dimension_numbers = #tpu.dot_dimension_numbers<[1], [0], [0], [1], [0, 0, 1, 1], [], []>} : vector<8x16xbf16>, vector<16x64xbf16>, vector<8x64xf32> -> vector<8x64xf32>
    %444 = arith.addf %441, %443 : vector<8x64xf32>
    %445 = arith.negf %444 : vector<8x64xf32>
    %446 = math.exp %445 : vector<8x64xf32>
    %cst_58 = arith.constant 1.000000e+00 : f32
    %447 = vector.broadcast %cst_58 : f32 to vector<8x64xf32>
    %448 = arith.addf %447, %446 : vector<8x64xf32>
    %449 = arith.divf %447, %448 : vector<8x64xf32>
    %450 = vector.extract_strided_slice %444 {offsets = [0, 32], sizes = [8, 16], strides = [1, 1]} : vector<8x64xf32> to vector<8x16xf32>
    %451 = math.tanh %450 : vector<8x16xf32>
    %452 = vector.extract_strided_slice %449 {offsets = [0, 16], sizes = [8, 16], strides = [1, 1]} : vector<8x64xf32> to vector<8x16xf32>
    %453 = arith.mulf %452, %436 : vector<8x16xf32>
    %454 = vector.extract_strided_slice %449 {offsets = [0, 0], sizes = [8, 16], strides = [1, 1]} : vector<8x64xf32> to vector<8x16xf32>
    %455 = arith.mulf %454, %451 : vector<8x16xf32>
    %456 = arith.addf %453, %455 : vector<8x16xf32>
    %457 = vector.extract_strided_slice %449 {offsets = [0, 48], sizes = [8, 16], strides = [1, 1]} : vector<8x64xf32> to vector<8x16xf32>
    %458 = math.tanh %456 : vector<8x16xf32>
    %459 = arith.mulf %457, %458 : vector<8x16xf32>
    %460 = vector.extract_strided_slice %336 {offsets = [48, 0], sizes = [8, 64], strides = [1, 1]} : vector<64x64xf32> to vector<8x64xf32>
    %461 = arith.addf %460, %333 : vector<8x64xf32>
    %462 = arith.truncf %459 : vector<8x16xf32> to vector<8x16xbf16>
    %cst_59 = arith.constant dense<0.000000e+00> : vector<8x64xf32>
    %463 = tpu.matmul %462, %337, %cst_59 {dimension_numbers = #tpu.dot_dimension_numbers<[1], [0], [0], [1], [0, 0, 1, 1], [], []>} : vector<8x16xbf16>, vector<16x64xbf16>, vector<8x64xf32> -> vector<8x64xf32>
    %464 = arith.addf %461, %463 : vector<8x64xf32>
    %465 = arith.negf %464 : vector<8x64xf32>
    %466 = math.exp %465 : vector<8x64xf32>
    %cst_60 = arith.constant 1.000000e+00 : f32
    %467 = vector.broadcast %cst_60 : f32 to vector<8x64xf32>
    %468 = arith.addf %467, %466 : vector<8x64xf32>
    %469 = arith.divf %467, %468 : vector<8x64xf32>
    %470 = vector.extract_strided_slice %464 {offsets = [0, 32], sizes = [8, 16], strides = [1, 1]} : vector<8x64xf32> to vector<8x16xf32>
    %471 = math.tanh %470 : vector<8x16xf32>
    %472 = vector.extract_strided_slice %469 {offsets = [0, 16], sizes = [8, 16], strides = [1, 1]} : vector<8x64xf32> to vector<8x16xf32>
    %473 = arith.mulf %472, %456 : vector<8x16xf32>
    %474 = vector.extract_strided_slice %469 {offsets = [0, 0], sizes = [8, 16], strides = [1, 1]} : vector<8x64xf32> to vector<8x16xf32>
    %475 = arith.mulf %474, %471 : vector<8x16xf32>
    %476 = arith.addf %473, %475 : vector<8x16xf32>
    %477 = vector.extract_strided_slice %469 {offsets = [0, 48], sizes = [8, 16], strides = [1, 1]} : vector<8x64xf32> to vector<8x16xf32>
    %478 = math.tanh %476 : vector<8x16xf32>
    %479 = arith.mulf %477, %478 : vector<8x16xf32>
    %480 = vector.extract_strided_slice %336 {offsets = [56, 0], sizes = [8, 64], strides = [1, 1]} : vector<64x64xf32> to vector<8x64xf32>
    %481 = arith.addf %480, %333 : vector<8x64xf32>
    %482 = arith.truncf %479 : vector<8x16xf32> to vector<8x16xbf16>
    %cst_61 = arith.constant dense<0.000000e+00> : vector<8x64xf32>
    %483 = tpu.matmul %482, %337, %cst_61 {dimension_numbers = #tpu.dot_dimension_numbers<[1], [0], [0], [1], [0, 0, 1, 1], [], []>} : vector<8x16xbf16>, vector<16x64xbf16>, vector<8x64xf32> -> vector<8x64xf32>
    %484 = arith.addf %481, %483 : vector<8x64xf32>
    %485 = arith.negf %484 : vector<8x64xf32>
    %486 = math.exp %485 : vector<8x64xf32>
    %cst_62 = arith.constant 1.000000e+00 : f32
    %487 = vector.broadcast %cst_62 : f32 to vector<8x64xf32>
    %488 = arith.addf %487, %486 : vector<8x64xf32>
    %489 = arith.divf %487, %488 : vector<8x64xf32>
    %490 = vector.extract_strided_slice %484 {offsets = [0, 32], sizes = [8, 16], strides = [1, 1]} : vector<8x64xf32> to vector<8x16xf32>
    %491 = math.tanh %490 : vector<8x16xf32>
    %492 = vector.extract_strided_slice %489 {offsets = [0, 16], sizes = [8, 16], strides = [1, 1]} : vector<8x64xf32> to vector<8x16xf32>
    %493 = arith.mulf %492, %476 : vector<8x16xf32>
    %494 = vector.extract_strided_slice %489 {offsets = [0, 0], sizes = [8, 16], strides = [1, 1]} : vector<8x64xf32> to vector<8x16xf32>
    %495 = arith.mulf %494, %491 : vector<8x16xf32>
    %496 = arith.addf %493, %495 : vector<8x16xf32>
    %497 = vector.extract_strided_slice %489 {offsets = [0, 48], sizes = [8, 16], strides = [1, 1]} : vector<8x64xf32> to vector<8x16xf32>
    %498 = math.tanh %496 : vector<8x16xf32>
    %499 = arith.mulf %497, %498 : vector<8x16xf32>
    %500 = vector.extract_strided_slice %1 {offsets = [32, 0], sizes = [16, 64], strides = [1, 1]} : vector<80x128xf32> to vector<16x64xf32>
    %cst_63 = arith.constant dense<0.000000e+00> : vector<8x64xf32>
    %501 = tpu.matmul %499, %500, %cst_63 {dimension_numbers = #tpu.dot_dimension_numbers<[1], [0], [0], [1], [0, 0, 1, 1], [], []>} : vector<8x16xf32>, vector<16x64xf32>, vector<8x64xf32> -> vector<8x64xf32>
    %502 = vector.extract_strided_slice %1 {offsets = [72, 0], sizes = [1, 64], strides = [1, 1]} : vector<80x128xf32> to vector<1x64xf32>
    %503 = vector.broadcast %502 : vector<1x64xf32> to vector<8x64xf32>
    %504 = arith.addf %501, %503 : vector<8x64xf32>
    %cst_64 = arith.constant 0.000000e+00 : f32
    %505 = vector.broadcast %cst_64 : f32 to vector<8x56xf32>
    %506 = tpu.concatenate %504, %319, %505 in 1 : vector<8x64xf32>, vector<8x8xf32>, vector<8x56xf32> -> vector<8x128xf32>
    %c0_65 = arith.constant 0 : index
    %c0_66 = arith.constant 0 : index
    %507 = vector.load %arg4[%c0_65, %c0_66] : memref<8x128xf32, #tpu.memory_space<vmem>>, vector<8x128xf32>
    tpu.vector_store %arg4[%c0_65, %c0_66], %506 {strides = array<i32>} : memref<8x128xf32, #tpu.memory_space<vmem>>, vector<8x128xf32>,
    return
  }
}

</mosaic_0001>

<llo_original>
// kernel: forward.1
$region0: #{forward.1}
  #allocation0 [shape = 'u32[]', space=smem, size = 0x4, offset = 0x4, fixed_abs, tag = 'smem constant byte address 0x4 - core index']
  #allocation1 [shape = 'u32[144,128]{1,0:T(1,128)}', space=vmem, size = 0x12000, scoped, tag = 'internal scratch']
  %s0 = inlined_call_operand.vmem [shape: bf16[128,8], index: 0, kind: input, shape index: {}]
  %s1 = inlined_call_operand.vmem [shape: f32[8,4], index: 1, kind: input, shape index: {}]
  %s2 = inlined_call_operand.vmem [shape: bf16[96,128], index: 2, kind: input, shape index: {}]
  %s3 = inlined_call_operand.vmem [shape: f32[80,128], index: 3, kind: input, shape index: {}]
  %s4 = inlined_call_operand.vmem [shape: f32[8,128], index: 4, kind: output, shape index: {}]
  %s5 = sld [smem:[#allocation0]]
  $region26: #{forward.1} parent=0
    _
  %s7 = ssub.s32 1, %s5
  %s8 = scalar_select 0, %s7, %s5
  // Predicated region
  $region2: #{forward.1} parent=0 // pred_check
    _
  $region3: #{forward.1} parent=0 // pred_check_branch
    %10 = sbr.rel (0) target = $region5
  $region4: #{forward.1} parent=0 // pred_region
    _
  $region5: #{forward.1} parent=0 // pred_fallthru
    _
  // Predicated region
  $region6: #{forward.1} parent=0 // pred_check
    _
  $region7: #{forward.1} parent=0 // pred_check_branch
    %12 = sbr.rel (0) target = $region9
  $region8: #{forward.1} parent=0 // pred_region
    _
  $region9: #{forward.1} parent=0 // pred_fallthru
    _
  // Predicated region
  $region10: #{forward.1} parent=0 // pred_check
    _
  $region11: #{forward.1} parent=0 // pred_check_branch
    %14 = sbr.rel (0) target = $region13
  $region12: #{forward.1} parent=0 // pred_region
    _
  $region13: #{forward.1} parent=0 // pred_fallthru
    _
  // Predicated region
  $region14: #{forward.1} parent=0 // pred_check
    _
  $region15: #{forward.1} parent=0 // pred_check_branch
    %16 = sbr.rel (0) target = $region17
  $region16: #{forward.1} parent=0 // pred_region
    _
  $region17: #{forward.1} parent=0 // pred_fallthru
    _
  %v18 = vld [vmem:[%s2] sm:$0xf]
  %v19 = vld [vmem:[%s2 + $0x8] sm:$0xf]
  %v20 = vld [vmem:[%s2 + $0xc] sm:$0xf]
  %v21 = vld [vmem:[%s2 + $0x10] sm:$0xf]
  %v22 = vld [vmem:[%s2 + $0x14] sm:$0xf]
  %v23 = vld [vmem:[%s2 + $0x18] sm:$0xf]
  %v24 = vld [vmem:[%s2 + $0x20] sm:$0xf]
  %v25 = vld [vmem:[%s2 + $0x28] sm:$0xf]
  %v26 = vld [vmem:[%s2 + $0x2c] sm:$0xf]
  %v27 = vld [vmem:[%s3] sm:$0xff]
  %v28 = vld [vmem:[%s3 + $0x8] sm:$0xff]
  %v29 = vld [vmem:[%s3 + $0x10] sm:$0xff]
  %v30 = vld [vmem:[%s3 + $0x18] sm:$0xff]
  %v31 = vld [vmem:[%s3 + $0x20] sm:$0xff]
  %v32 = vld [vmem:[%s3 + $0x28] sm:$0xff]
  %v33 = vld [vmem:[%s3 + $0x30] sm:$0xff]
  %v34 = vld [vmem:[%s3 + $0x38] sm:$0xff]
  %v35 = vld [vmem:[%s3 + $0x40] sm:$0xff]
  %v36 = vld [vmem:[%s3 + $0x48] sm:$0xff]
  %v37 = vld [vmem:[%s0] sm:$0xf]
  %v38 = vld [vmem:[%s0 + $0x4] sm:$0xf]
  %v39 = vld [vmem:[%s0 + $0x8] sm:$0xf]
  %v40 = vld [vmem:[%s0 + $0xc] sm:$0xf]
  %v41 = vld [vmem:[%s0 + $0x10] sm:$0xf]
  %v42 = vld [vmem:[%s0 + $0x14] sm:$0xf]
  %v43 = vld [vmem:[%s0 + $0x18] sm:$0xf]
  %v44 = vld [vmem:[%s0 + $0x1c] sm:$0xf]
  %v45 = vld [vmem:[%s0 + $0x20] sm:$0xf]
  %v46 = vld [vmem:[%s0 + $0x24] sm:$0xf]
  %v47 = vld [vmem:[%s0 + $0x28] sm:$0xf]
  %v48 = vld [vmem:[%s0 + $0x2c] sm:$0xf]
  %v49 = vld [vmem:[%s0 + $0x30] sm:$0xf]
  %v50 = vld [vmem:[%s0 + $0x34] sm:$0xf]
  %v51 = vld [vmem:[%s0 + $0x38] sm:$0xf]
  %v52 = vld [vmem:[%s0 + $0x3c] sm:$0xf]
  %v53 = vlaneseq
  %v54 = vshrl.u32 %v53, 7
  %v55 = vsub.s32 0, %v54
  %v56 = vrot.slane %v33, %v55
  %v73 = vunpack.c.l.b16 %v37
  %v74 = vunpack.c.l.b16 %v38
  %v75 = vunpack.c.l.b16 %v39
  %v76 = vunpack.c.l.b16 %v40
  %v77 = vunpack.c.l.b16 %v41
  %v78 = vunpack.c.l.b16 %v42
  %v79 = vunpack.c.l.b16 %v43
  %v80 = vunpack.c.l.b16 %v44
  %v81 = vunpack.c.l.b16 %v45
  %v82 = vunpack.c.l.b16 %v46
  %v83 = vunpack.c.l.b16 %v47
  %v84 = vunpack.c.l.b16 %v48
  %v85 = vunpack.c.l.b16 %v49
  %v86 = vunpack.c.l.b16 %v50
  %v87 = vunpack.c.l.b16 %v51
  %v88 = vunpack.c.l.b16 %v52
  %v89 = vpack.c.b16 %v74, %v73
  %v90 = vpack.c.b16 %v76, %v75
  %v91 = vpack.c.b16 %v78, %v77
  %v92 = vpack.c.b16 %v80, %v79
  %v93 = vpack.c.b16 %v82, %v81
  %v94 = vpack.c.b16 %v84, %v83
  %v95 = vpack.c.b16 %v86, %v85
  %v96 = vpack.c.b16 %v88, %v87
  %vm97 = vcmask 64512
  %v99 = vsel %vm97, %v89, 0
  %v102 = vsel %vm97, %v90, 0
  %v105 = vsel %vm97, %v91, 0
  %v108 = vsel %vm97, %v92, 0
  %v111 = vsel %vm97, %v93, 0
  %v114 = vsel %vm97, %v94, 0
  %v117 = vsel %vm97, %v95, 0
  %v120 = vsel %vm97, %v96, 0
  %vm122 = vcmask 1043456
  %v124 = vsel %vm122, %v18, 0
  %126 = vmatprep.subr.bf16.mxu0 0
  %127 = vmatpush1.bf16.msra.mxu0 %v124
  %128 = vmatprep.subr.bf16.mxu0 0
  %129 = vmatpush1.bf16.msra.mxu0 0
  %130 = vmatprep.subr.bf16.mxu0 0
  %131 = vmatpush1.bf16.msra.mxu0 0
  %132 = vmatprep.subr.bf16.mxu0 0
  %133 = vmatpush1.bf16.msra.mxu0 0
  %134 = vmatprep.subr.bf16.mxu0 0
  %135 = vmatpush1.bf16.msra.mxu0 0
  %136 = vmatprep.subr.bf16.mxu0 0
  %137 = vmatpush1.bf16.msra.mxu0 0
  %138 = vmatprep.subr.bf16.mxu0 0
  %139 = vmatpush1.bf16.msra.mxu0 0
  %140 = vmatprep.subr.bf16.mxu0 0
  %141 = vmatpush1.bf16.msra.mxu0 0
  %142 = vmatprep.subr.bf16.mxu0 0
  %143 = vmatpush1.bf16.msra.mxu0 0
  %144 = vmatprep.subr.bf16.mxu0 0
  %145 = vmatpush1.bf16.msra.mxu0 0
  %146 = vmatprep.subr.bf16.mxu0 0
  %147 = vmatpush1.bf16.msra.mxu0 0
  %148 = vmatprep.subr.bf16.mxu0 0
  %149 = vmatpush1.bf16.msra.mxu0 0
  %150 = vmatprep.subr.bf16.mxu0 0
  %151 = vmatpush1.bf16.msra.mxu0 0
  %152 = vmatprep.subr.bf16.mxu0 0
  %153 = vmatpush1.bf16.msra.mxu0 0
  %154 = vmatprep.subr.bf16.mxu0 0
  %155 = vmatpush1.bf16.msra.mxu0 0
  %156 = vmatprep.subr.bf16.mxu0 0
  %157 = vmatpush1.bf16.msra.mxu0 0
  %158 = vmatprep.mubr.bf16.mxu0 0
  %159 = vmatmul.mubr.bf16.gmra.mrb[0].mxu0 %v99
  %v160 = vpop.f32.mrb[0].mxu0
  %v161 = vadd.f32 %v56, %v160
  %v162 = vpop.f32.mrb[0].mxu0
  %v163 = vpop.f32.mrb[0].mxu0
  %v164 = vadd.f32 %v56, %v163
  %v165 = vpop.f32.mrb[0].mxu0
  %166 = vmatprep.mubr.bf16.mxu0 0
  %167 = vmatmul.mubr.bf16.gmra.mrb[0].mxu0 %v102
  %v168 = vpop.f32.mrb[0].mxu0
  %v169 = vadd.f32 %v56, %v168
  %v170 = vpop.f32.mrb[0].mxu0
  %v171 = vpop.f32.mrb[0].mxu0
  %v172 = vadd.f32 %v56, %v171
  %v173 = vpop.f32.mrb[0].mxu0
  %174 = vmatprep.mubr.bf16.mxu0 0
  %175 = vmatmul.mubr.bf16.gmra.mrb[0].mxu0 %v105
  %v176 = vpop.f32.mrb[0].mxu0
  %v177 = vadd.f32 %v56, %v176
  %v178 = vpop.f32.mrb[0].mxu0
  %v179 = vpop.f32.mrb[0].mxu0
  %v180 = vadd.f32 %v56, %v179
  %v181 = vpop.f32.mrb[0].mxu0
  %182 = vmatprep.mubr.bf16.mxu0 0
  %183 = vmatmul.mubr.bf16.gmra.mrb[0].mxu0 %v108
  %v184 = vpop.f32.mrb[0].mxu0
  %v185 = vadd.f32 %v56, %v184
  %v186 = vpop.f32.mrb[0].mxu0
  %v187 = vpop.f32.mrb[0].mxu0
  %v188 = vadd.f32 %v56, %v187
  %v189 = vpop.f32.mrb[0].mxu0
  %190 = vmatprep.mubr.bf16.mxu0 0
  %191 = vmatmul.mubr.bf16.gmra.mrb[0].mxu0 %v111
  %v192 = vpop.f32.mrb[0].mxu0
  %v193 = vadd.f32 %v56, %v192
  %v194 = vpop.f32.mrb[0].mxu0
  %v195 = vpop.f32.mrb[0].mxu0
  %v196 = vadd.f32 %v56, %v195
  %v197 = vpop.f32.mrb[0].mxu0
  %198 = vmatprep.mubr.bf16.mxu0 0
  %199 = vmatmul.mubr.bf16.gmra.mrb[0].mxu0 %v114
  %v200 = vpop.f32.mrb[0].mxu0
  %v201 = vadd.f32 %v56, %v200
  %v202 = vpop.f32.mrb[0].mxu0
  %v203 = vpop.f32.mrb[0].mxu0
  %v204 = vadd.f32 %v56, %v203
  %v205 = vpop.f32.mrb[0].mxu0
  %206 = vmatprep.mubr.bf16.mxu0 0
  %207 = vmatmul.mubr.bf16.gmra.mrb[0].mxu0 %v117
  %v208 = vpop.f32.mrb[0].mxu0
  %v209 = vadd.f32 %v56, %v208
  %v210 = vpop.f32.mrb[0].mxu0
  %v211 = vpop.f32.mrb[0].mxu0
  %v212 = vadd.f32 %v56, %v211
  %v213 = vpop.f32.mrb[0].mxu0
  %214 = vmatprep.mubr.bf16.mxu0 0
  %215 = vmatmul.mubr.bf16.gmra.mrb[0].mxu0 %v120
  %v216 = vpop.f32.mrb[0].mxu0
  %v217 = vadd.f32 %v56, %v216
  %v218 = vpop.f32.mrb[0].mxu0
  %v219 = vpop.f32.mrb[0].mxu0
  %v220 = vadd.f32 %v56, %v219
  %v221 = vpop.f32.mrb[0].mxu0
  %222 = vdwg.mxu0
  %v227 = vunpack.c.l.b16 %v19
  %v228 = vunpack.c.l.b16 %v20
  %v229 = vunpack.c.l.b16 %v21
  %v230 = vunpack.c.l.b16 %v22
  %v231 = vpack.c.b16 %v228, %v227
  %v232 = vpack.c.b16 %v230, %v229
  %vm235 = vcmask 261120
  %v237 = vsel %vm235, 0, 0
  %239 = vmatprep.subr.bf16.mxu0 0
  %240 = vmatpush1.bf16.msra.mxu0 %v231
  %241 = vmatprep.subr.bf16.mxu0 0
  %242 = vmatpush1.bf16.msra.mxu0 %v232
  %243 = vmatprep.subr.bf16.mxu0 0
  %244 = vmatpush1.bf16.msra.mxu0 0
  %245 = vmatprep.subr.bf16.mxu0 0
  %246 = vmatpush1.bf16.msra.mxu0 0
  %247 = vmatprep.subr.bf16.mxu0 0
  %248 = vmatpush1.bf16.msra.mxu0 0
  %249 = vmatprep.subr.bf16.mxu0 0
  %250 = vmatpush1.bf16.msra.mxu0 0
  %251 = vmatprep.subr.bf16.mxu0 0
  %252 = vmatpush1.bf16.msra.mxu0 0
  %253 = vmatprep.subr.bf16.mxu0 0
  %254 = vmatpush1.bf16.msra.mxu0 0
  %255 = vmatprep.subr.bf16.mxu0 0
  %256 = vmatpush1.bf16.msra.mxu0 0
  %257 = vmatprep.subr.bf16.mxu0 0
  %258 = vmatpush1.bf16.msra.mxu0 0
  %259 = vmatprep.subr.bf16.mxu0 0
  %260 = vmatpush1.bf16.msra.mxu0 0
  %261 = vmatprep.subr.bf16.mxu0 0
  %262 = vmatpush1.bf16.msra.mxu0 0
  %263 = vmatprep.subr.bf16.mxu0 0
  %264 = vmatpush1.bf16.msra.mxu0 0
  %265 = vmatprep.subr.bf16.mxu0 0
  %266 = vmatpush1.bf16.msra.mxu0 0
  %267 = vmatprep.subr.bf16.mxu0 0
  %268 = vmatpush1.bf16.msra.mxu0 0
  %269 = vmatprep.subr.bf16.mxu0 0
  %270 = vmatpush1.bf16.msra.mxu0 0
  %271 = vmatprep.mubr.bf16.mxu0 0
  %272 = vmatmul.mubr.bf16.gmra.mrb[0].mxu0 %v237
  %v273 = vpop.f32.mrb[0].mxu0
  %v274 = vadd.f32 0.0, %v273
  %v275 = vpop.f32.mrb[0].mxu0
  %v276 = vpop.f32.mrb[0].mxu0
  %v277 = vpop.f32.mrb[0].mxu0
  %278 = vdwg.mxu0
  %v279 = vadd.f32 %v161, %v274
  %v280 = vxor.u32 %v279, 2147483648
  %v281 = vmul.f32 %v280, 1.442695
  %v282 = vpow.pop %v281
  %v283 = vadd.f32 %v282, 1.0
  %v284 = vrcp.pop %v283
  %v285 = vmul.f32 1.0, %v284
  %v286 = vtanh.pop %v279
  %v287 = vmul.f32 %v285, 0.0
  %289 = vrot.lane.b32.xlu0 %v286, 64
  %v290 = vpop.permute.xlu0 %289
  %v292 = vmul.f32 %v285, %v290
  %294 = vrot.lane.b32.xlu0 %v292, 32
  %v295 = vpop.permute.xlu0 %294
  %v297 = vadd.f32 %v287, %v295
  %v298 = vtanh.pop %v297
  %300 = vrot.lane.b32.xlu0 %v298, 64
  %v301 = vpop.permute.xlu0 %300
  %v303 = vmul.f32 %v285, %v301
  %v304 = vpack.c.bf16 %v303, %v303
  %306 = vrot.lane.b32.xlu0 %v304, 32
  %v307 = vpop.permute.xlu0 %306
  %v309 = vsel %vm235, %v307, 0
  %311 = vmatprep.subr.bf16.mxu0 0
  %312 = vmatpush1.bf16.msra.mxu0 %v231
  %313 = vmatprep.subr.bf16.mxu0 0
  %314 = vmatpush1.bf16.msra.mxu0 %v232
  %315 = vmatprep.subr.bf16.mxu0 0
  %316 = vmatpush1.bf16.msra.mxu0 0
  %317 = vmatprep.subr.bf16.mxu0 0
  %318 = vmatpush1.bf16.msra.mxu0 0
  %319 = vmatprep.subr.bf16.mxu0 0
  %320 = vmatpush1.bf16.msra.mxu0 0
  %321 = vmatprep.subr.bf16.mxu0 0
  %322 = vmatpush1.bf16.msra.mxu0 0
  %323 = vmatprep.subr.bf16.mxu0 0
  %324 = vmatpush1.bf16.msra.mxu0 0
  %325 = vmatprep.subr.bf16.mxu0 0
  %326 = vmatpush1.bf16.msra.mxu0 0
  %327 = vmatprep.subr.bf16.mxu0 0
  %328 = vmatpush1.bf16.msra.mxu0 0
  %329 = vmatprep.subr.bf16.mxu0 0
  %330 = vmatpush1.bf16.msra.mxu0 0
  %331 = vmatprep.subr.bf16.mxu0 0
  %332 = vmatpush1.bf16.msra.mxu0 0
  %333 = vmatprep.subr.bf16.mxu0 0
  %334 = vmatpush1.bf16.msra.mxu0 0
  %335 = vmatprep.subr.bf16.mxu0 0
  %336 = vmatpush1.bf16.msra.mxu0 0
  %337 = vmatprep.subr.bf16.mxu0 0
  %338 = vmatpush1.bf16.msra.mxu0 0
  %339 = vmatprep.subr.bf16.mxu0 0
  %340 = vmatpush1.bf16.msra.mxu0 0
  %341 = vmatprep.subr.bf16.mxu0 0
  %342 = vmatpush1.bf16.msra.mxu0 0
  %343 = vmatprep.mubr.bf16.mxu0 0
  %344 = vmatmul.mubr.bf16.gmra.mrb[0].mxu0 %v309
  %v345 = vpop.f32.mrb[0].mxu0
  %v346 = vadd.f32 0.0, %v345
  %v347 = vpop.f32.mrb[0].mxu0
  %v348 = vpop.f32.mrb[0].mxu0
  %v349 = vpop.f32.mrb[0].mxu0
  %350 = vdwg.mxu0
  %v351 = vadd.f32 %v164, %v346
  %v352 = vxor.u32 %v351, 2147483648
  %v353 = vmul.f32 %v352, 1.442695
  %v354 = vpow.pop %v353
  %v355 = vadd.f32 %v354, 1.0
  %v356 = vrcp.pop %v355
  %v357 = vmul.f32 1.0, %v356
  %v358 = vtanh.pop %v351
  %v359 = vmul.f32 %v357, %v297
  %361 = vrot.lane.b32.xlu0 %v358, 64
  %v362 = vpop.permute.xlu0 %361
  %v364 = vmul.f32 %v357, %v362
  %366 = vrot.lane.b32.xlu0 %v364, 32
  %v367 = vpop.permute.xlu0 %366
  %v369 = vadd.f32 %v359, %v367
  %v370 = vtanh.pop %v369
  %372 = vrot.lane.b32.xlu0 %v370, 64
  %v373 = vpop.permute.xlu0 %372
  %v375 = vmul.f32 %v357, %v373
  %v376 = vpack.c.bf16 %v375, %v375
  %378 = vrot.lane.b32.xlu0 %v376, 32
  %v379 = vpop.permute.xlu0 %378
  %v381 = vsel %vm235, %v379, 0
  %383 = vmatprep.subr.bf16.mxu0 0
  %384 = vmatpush1.bf16.msra.mxu0 %v231
  %385 = vmatprep.subr.bf16.mxu0 0
  %386 = vmatpush1.bf16.msra.mxu0 %v232
  %387 = vmatprep.subr.bf16.mxu0 0
  %388 = vmatpush1.bf16.msra.mxu0 0
  %389 = vmatprep.subr.bf16.mxu0 0
  %390 = vmatpush1.bf16.msra.mxu0 0
  %391 = vmatprep.subr.bf16.mxu0 0
  %392 = vmatpush1.bf16.msra.mxu0 0
  %393 = vmatprep.subr.bf16.mxu0 0
  %394 = vmatpush1.bf16.msra.mxu0 0
  %395 = vmatprep.subr.bf16.mxu0 0
  %396 = vmatpush1.bf16.msra.mxu0 0
  %397 = vmatprep.subr.bf16.mxu0 0
  %398 = vmatpush1.bf16.msra.mxu0 0
  %399 = vmatprep.subr.bf16.mxu0 0
  %400 = vmatpush1.bf16.msra.mxu0 0
  %401 = vmatprep.subr.bf16.mxu0 0
  %402 = vmatpush1.bf16.msra.mxu0 0
  %403 = vmatprep.subr.bf16.mxu0 0
  %404 = vmatpush1.bf16.msra.mxu0 0
  %405 = vmatprep.subr.bf16.mxu0 0
  %406 = vmatpush1.bf16.msra.mxu0 0
  %407 = vmatprep.subr.bf16.mxu0 0
  %408 = vmatpush1.bf16.msra.mxu0 0
  %409 = vmatprep.subr.bf16.mxu0 0
  %410 = vmatpush1.bf16.msra.mxu0 0
  %411 = vmatprep.subr.bf16.mxu0 0
  %412 = vmatpush1.bf16.msra.mxu0 0
  %413 = vmatprep.subr.bf16.mxu0 0
  %414 = vmatpush1.bf16.msra.mxu0 0
  %415 = vmatprep.mubr.bf16.mxu0 0
  %416 = vmatmul.mubr.bf16.gmra.mrb[0].mxu0 %v381
  %v417 = vpop.f32.mrb[0].mxu0
  %v418 = vadd.f32 0.0, %v417
  %v419 = vpop.f32.mrb[0].mxu0
  %v420 = vpop.f32.mrb[0].mxu0
  %v421 = vpop.f32.mrb[0].mxu0
  %422 = vdwg.mxu0
  %v423 = vadd.f32 %v169, %v418
  %v424 = vxor.u32 %v423, 2147483648
  %v425 = vmul.f32 %v424, 1.442695
  %v426 = vpow.pop %v425
  %v427 = vadd.f32 %v426, 1.0
  %v428 = vrcp.pop %v427
  %v429 = vmul.f32 1.0, %v428
  %v430 = vtanh.pop %v423
  %v431 = vmul.f32 %v429, %v369
  %433 = vrot.lane.b32.xlu0 %v430, 64
  %v434 = vpop.permute.xlu0 %433
  %v436 = vmul.f32 %v429, %v434
  %438 = vrot.lane.b32.xlu0 %v436, 32
  %v439 = vpop.permute.xlu0 %438
  %v441 = vadd.f32 %v431, %v439
  %v442 = vtanh.pop %v441
  %444 = vrot.lane.b32.xlu0 %v442, 64
  %v445 = vpop.permute.xlu0 %444
  %v447 = vmul.f32 %v429, %v445
  %v448 = vpack.c.bf16 %v447, %v447
  %450 = vrot.lane.b32.xlu0 %v448, 32
  %v451 = vpop.permute.xlu0 %450
  %v453 = vsel %vm235, %v451, 0
  %455 = vmatprep.subr.bf16.mxu0 0
  %456 = vmatpush1.bf16.msra.mxu0 %v231
  %457 = vmatprep.subr.bf16.mxu0 0
  %458 = vmatpush1.bf16.msra.mxu0 %v232
  %459 = vmatprep.subr.bf16.mxu0 0
  %460 = vmatpush1.bf16.msra.mxu0 0
  %461 = vmatprep.subr.bf16.mxu0 0
  %462 = vmatpush1.bf16.msra.mxu0 0
  %463 = vmatprep.subr.bf16.mxu0 0
  %464 = vmatpush1.bf16.msra.mxu0 0
  %465 = vmatprep.subr.bf16.mxu0 0
  %466 = vmatpush1.bf16.msra.mxu0 0
  %467 = vmatprep.subr.bf16.mxu0 0
  %468 = vmatpush1.bf16.msra.mxu0 0
  %469 = vmatprep.subr.bf16.mxu0 0
  %470 = vmatpush1.bf16.msra.mxu0 0
  %471 = vmatprep.subr.bf16.mxu0 0
  %472 = vmatpush1.bf16.msra.mxu0 0
  %473 = vmatprep.subr.bf16.mxu0 0
  %474 = vmatpush1.bf16.msra.mxu0 0
  %475 = vmatprep.subr.bf16.mxu0 0
  %476 = vmatpush1.bf16.msra.mxu0 0
  %477 = vmatprep.subr.bf16.mxu0 0
  %478 = vmatpush1.bf16.msra.mxu0 0
  %479 = vmatprep.subr.bf16.mxu0 0
  %480 = vmatpush1.bf16.msra.mxu0 0
  %481 = vmatprep.subr.bf16.mxu0 0
  %482 = vmatpush1.bf16.msra.mxu0 0
  %483 = vmatprep.subr.bf16.mxu0 0
  %484 = vmatpush1.bf16.msra.mxu0 0
  %485 = vmatprep.subr.bf16.mxu0 0
  %486 = vmatpush1.bf16.msra.mxu0 0
  %487 = vmatprep.mubr.bf16.mxu0 0
  %488 = vmatmul.mubr.bf16.gmra.mrb[0].mxu0 %v453
  %v489 = vpop.f32.mrb[0].mxu0
  %v490 = vadd.f32 0.0, %v489
  %v491 = vpop.f32.mrb[0].mxu0
  %v492 = vpop.f32.mrb[0].mxu0
  %v493 = vpop.f32.mrb[0].mxu0
  %494 = vdwg.mxu0
  %v495 = vadd.f32 %v172, %v490
  %v496 = vxor.u32 %v495, 2147483648
  %v497 = vmul.f32 %v496, 1.442695
  %v498 = vpow.pop %v497
  %v499 = vadd.f32 %v498, 1.0
  %v500 = vrcp.pop %v499
  %v501 = vmul.f32 1.0, %v500
  %v502 = vtanh.pop %v495
  %v503 = vmul.f32 %v501, %v441
  %505 = vrot.lane.b32.xlu0 %v502, 64
  %v506 = vpop.permute.xlu0 %505
  %v508 = vmul.f32 %v501, %v506
  %510 = vrot.lane.b32.xlu0 %v508, 32
  %v511 = vpop.permute.xlu0 %510
  %v513 = vadd.f32 %v503, %v511
  %v514 = vtanh.pop %v513
  %516 = vrot.lane.b32.xlu0 %v514, 64
  %v517 = vpop.permute.xlu0 %516
  %v519 = vmul.f32 %v501, %v517
  %v520 = vpack.c.bf16 %v519, %v519
  %522 = vrot.lane.b32.xlu0 %v520, 32
  %v523 = vpop.permute.xlu0 %522
  %v525 = vsel %vm235, %v523, 0
  %527 = vmatprep.subr.bf16.mxu0 0
  %528 = vmatpush1.bf16.msra.mxu0 %v231
  %529 = vmatprep.subr.bf16.mxu0 0
  %530 = vmatpush1.bf16.msra.mxu0 %v232
  %531 = vmatprep.subr.bf16.mxu0 0
  %532 = vmatpush1.bf16.msra.mxu0 0
  %533 = vmatprep.subr.bf16.mxu0 0
  %534 = vmatpush1.bf16.msra.mxu0 0
  %535 = vmatprep.subr.bf16.mxu0 0
  %536 = vmatpush1.bf16.msra.mxu0 0
  %537 = vmatprep.subr.bf16.mxu0 0
  %538 = vmatpush1.bf16.msra.mxu0 0
  %539 = vmatprep.subr.bf16.mxu0 0
  %540 = vmatpush1.bf16.msra.mxu0 0
  %541 = vmatprep.subr.bf16.mxu0 0
  %542 = vmatpush1.bf16.msra.mxu0 0
  %543 = vmatprep.subr.bf16.mxu0 0
  %544 = vmatpush1.bf16.msra.mxu0 0
  %545 = vmatprep.subr.bf16.mxu0 0
  %546 = vmatpush1.bf16.msra.mxu0 0
  %547 = vmatprep.subr.bf16.mxu0 0
  %548 = vmatpush1.bf16.msra.mxu0 0
  %549 = vmatprep.subr.bf16.mxu0 0
  %550 = vmatpush1.bf16.msra.mxu0 0
  %551 = vmatprep.subr.bf16.mxu0 0
  %552 = vmatpush1.bf16.msra.mxu0 0
  %553 = vmatprep.subr.bf16.mxu0 0
  %554 = vmatpush1.bf16.msra.mxu0 0
  %555 = vmatprep.subr.bf16.mxu0 0
  %556 = vmatpush1.bf16.msra.mxu0 0
  %557 = vmatprep.subr.bf16.mxu0 0
  %558 = vmatpush1.bf16.msra.mxu0 0
  %559 = vmatprep.mubr.bf16.mxu0 0
  %560 = vmatmul.mubr.bf16.gmra.mrb[0].mxu0 %v525
  %v561 = vpop.f32.mrb[0].mxu0
  %v562 = vadd.f32 0.0, %v561
  %v563 = vpop.f32.mrb[0].mxu0
  %v564 = vpop.f32.mrb[0].mxu0
  %v565 = vpop.f32.mrb[0].mxu0
  %566 = vdwg.mxu0
  %v567 = vadd.f32 %v177, %v562
  %v568 = vxor.u32 %v567, 2147483648
  %v569 = vmul.f32 %v568, 1.442695
  %v570 = vpow.pop %v569
  %v571 = vadd.f32 %v570, 1.0
  %v572 = vrcp.pop %v571
  %v573 = vmul.f32 1.0, %v572
  %v574 = vtanh.pop %v567
  %v575 = vmul.f32 %v573, %v513
  %577 = vrot.lane.b32.xlu0 %v574, 64
  %v578 = vpop.permute.xlu0 %577
  %v580 = vmul.f32 %v573, %v578
  %582 = vrot.lane.b32.xlu0 %v580, 32
  %v583 = vpop.permute.xlu0 %582
  %v585 = vadd.f32 %v575, %v583
  %v586 = vtanh.pop %v585
  %588 = vrot.lane.b32.xlu0 %v586, 64
  %v589 = vpop.permute.xlu0 %588
  %v591 = vmul.f32 %v573, %v589
  %v592 = vpack.c.bf16 %v591, %v591
  %594 = vrot.lane.b32.xlu0 %v592, 32
  %v595 = vpop.permute.xlu0 %594
  %v597 = vsel %vm235, %v595, 0
  %599 = vmatprep.subr.bf16.mxu0 0
  %600 = vmatpush1.bf16.msra.mxu0 %v231
  %601 = vmatprep.subr.bf16.mxu0 0
  %602 = vmatpush1.bf16.msra.mxu0 %v232
  %603 = vmatprep.subr.bf16.mxu0 0
  %604 = vmatpush1.bf16.msra.mxu0 0
  %605 = vmatprep.subr.bf16.mxu0 0
  %606 = vmatpush1.bf16.msra.mxu0 0
  %607 = vmatprep.subr.bf16.mxu0 0
  %608 = vmatpush1.bf16.msra.mxu0 0
  %609 = vmatprep.subr.bf16.mxu0 0
  %610 = vmatpush1.bf16.msra.mxu0 0
  %611 = vmatprep.subr.bf16.mxu0 0
  %612 = vmatpush1.bf16.msra.mxu0 0
  %613 = vmatprep.subr.bf16.mxu0 0
  %614 = vmatpush1.bf16.msra.mxu0 0
  %615 = vmatprep.subr.bf16.mxu0 0
  %616 = vmatpush1.bf16.msra.mxu0 0
  %617 = vmatprep.subr.bf16.mxu0 0
  %618 = vmatpush1.bf16.msra.mxu0 0
  %619 = vmatprep.subr.bf16.mxu0 0
  %620 = vmatpush1.bf16.msra.mxu0 0
  %621 = vmatprep.subr.bf16.mxu0 0
  %622 = vmatpush1.bf16.msra.mxu0 0
  %623 = vmatprep.subr.bf16.mxu0 0
  %624 = vmatpush1.bf16.msra.mxu0 0
  %625 = vmatprep.subr.bf16.mxu0 0
  %626 = vmatpush1.bf16.msra.mxu0 0
  %627 = vmatprep.subr.bf16.mxu0 0
  %628 = vmatpush1.bf16.msra.mxu0 0
  %629 = vmatprep.subr.bf16.mxu0 0
  %630 = vmatpush1.bf16.msra.mxu0 0
  %631 = vmatprep.mubr.bf16.mxu0 0
  %632 = vmatmul.mubr.bf16.gmra.mrb[0].mxu0 %v597
  %v633 = vpop.f32.mrb[0].mxu0
  %v634 = vadd.f32 0.0, %v633
  %v635 = vpop.f32.mrb[0].mxu0
  %v636 = vpop.f32.mrb[0].mxu0
  %v637 = vpop.f32.mrb[0].mxu0
  %638 = vdwg.mxu0
  %v639 = vadd.f32 %v180, %v634
  %v640 = vxor.u32 %v639, 2147483648
  %v641 = vmul.f32 %v640, 1.442695
  %v642 = vpow.pop %v641
  %v643 = vadd.f32 %v642, 1.0
  %v644 = vrcp.pop %v643
  %v645 = vmul.f32 1.0, %v644
  %v646 = vtanh.pop %v639
  %v647 = vmul.f32 %v645, %v585
  %649 = vrot.lane.b32.xlu0 %v646, 64
  %v650 = vpop.permute.xlu0 %649
  %v652 = vmul.f32 %v645, %v650
  %654 = vrot.lane.b32.xlu0 %v652, 32
  %v655 = vpop.permute.xlu0 %654
  %v657 = vadd.f32 %v647, %v655
  %v658 = vtanh.pop %v657
  %660 = vrot.lane.b32.xlu0 %v658, 64
  %v661 = vpop.permute.xlu0 %660
  %v663 = vmul.f32 %v645, %v661
  %v664 = vpack.c.bf16 %v663, %v663
  %666 = vrot.lane.b32.xlu0 %v664, 32
  %v667 = vpop.permute.xlu0 %666
  %v669 = vsel %vm235, %v667, 0
  %671 = vmatprep.subr.bf16.mxu0 0
  %672 = vmatpush1.bf16.msra.mxu0 %v231
  %673 = vmatprep.subr.bf16.mxu0 0
  %674 = vmatpush1.bf16.msra.mxu0 %v232
  %675 = vmatprep.subr.bf16.mxu0 0
  %676 = vmatpush1.bf16.msra.mxu0 0
  %677 = vmatprep.subr.bf16.mxu0 0
  %678 = vmatpush1.bf16.msra.mxu0 0
  %679 = vmatprep.subr.bf16.mxu0 0
  %680 = vmatpush1.bf16.msra.mxu0 0
  %681 = vmatprep.subr.bf16.mxu0 0
  %682 = vmatpush1.bf16.msra.mxu0 0
  %683 = vmatprep.subr.bf16.mxu0 0
  %684 = vmatpush1.bf16.msra.mxu0 0
  %685 = vmatprep.subr.bf16.mxu0 0
  %686 = vmatpush1.bf16.msra.mxu0 0
  %687 = vmatprep.subr.bf16.mxu0 0
  %688 = vmatpush1.bf16.msra.mxu0 0
  %689 = vmatprep.subr.bf16.mxu0 0
  %690 = vmatpush1.bf16.msra.mxu0 0
  %691 = vmatprep.subr.bf16.mxu0 0
  %692 = vmatpush1.bf16.msra.mxu0 0
  %693 = vmatprep.subr.bf16.mxu0 0
  %694 = vmatpush1.bf16.msra.mxu0 0
  %695 = vmatprep.subr.bf16.mxu0 0
  %696 = vmatpush1.bf16.msra.mxu0 0
  %697 = vmatprep.subr.bf16.mxu0 0
  %698 = vmatpush1.bf16.msra.mxu0 0
  %699 = vmatprep.subr.bf16.mxu0 0
  %700 = vmatpush1.bf16.msra.mxu0 0
  %701 = vmatprep.subr.bf16.mxu0 0
  %702 = vmatpush1.bf16.msra.mxu0 0
  %703 = vmatprep.mubr.bf16.mxu0 0
  %704 = vmatmul.mubr.bf16.gmra.mrb[0].mxu0 %v669
  %v705 = vpop.f32.mrb[0].mxu0
  %v706 = vadd.f32 0.0, %v705
  %v707 = vpop.f32.mrb[0].mxu0
  %v708 = vpop.f32.mrb[0].mxu0
  %v709 = vpop.f32.mrb[0].mxu0
  %710 = vdwg.mxu0
  %v711 = vadd.f32 %v185, %v706
  %v712 = vxor.u32 %v711, 2147483648
  %v713 = vmul.f32 %v712, 1.442695
  %v714 = vpow.pop %v713
  %v715 = vadd.f32 %v714, 1.0
  %v716 = vrcp.pop %v715
  %v717 = vmul.f32 1.0, %v716
  %v718 = vtanh.pop %v711
  %v719 = vmul.f32 %v717, %v657
  %721 = vrot.lane.b32.xlu0 %v718, 64
  %v722 = vpop.permute.xlu0 %721
  %v724 = vmul.f32 %v717, %v722
  %726 = vrot.lane.b32.xlu0 %v724, 32
  %v727 = vpop.permute.xlu0 %726
  %v729 = vadd.f32 %v719, %v727
  %v730 = vtanh.pop %v729
  %732 = vrot.lane.b32.xlu0 %v730, 64
  %v733 = vpop.permute.xlu0 %732
  %v735 = vmul.f32 %v717, %v733
  %v736 = vpack.c.bf16 %v735, %v735
  %738 = vrot.lane.b32.xlu0 %v736, 32
  %v739 = vpop.permute.xlu0 %738
  %v741 = vsel %vm235, %v739, 0
  %743 = vmatprep.subr.bf16.mxu0 0
  %744 = vmatpush1.bf16.msra.mxu0 %v231
  %745 = vmatprep.subr.bf16.mxu0 0
  %746 = vmatpush1.bf16.msra.mxu0 %v232
  %747 = vmatprep.subr.bf16.mxu0 0
  %748 = vmatpush1.bf16.msra.mxu0 0
  %749 = vmatprep.subr.bf16.mxu0 0
  %750 = vmatpush1.bf16.msra.mxu0 0
  %751 = vmatprep.subr.bf16.mxu0 0
  %752 = vmatpush1.bf16.msra.mxu0 0
  %753 = vmatprep.subr.bf16.mxu0 0
  %754 = vmatpush1.bf16.msra.mxu0 0
  %755 = vmatprep.subr.bf16.mxu0 0
  %756 = vmatpush1.bf16.msra.mxu0 0
  %757 = vmatprep.subr.bf16.mxu0 0
  %758 = vmatpush1.bf16.msra.mxu0 0
  %759 = vmatprep.subr.bf16.mxu0 0
  %760 = vmatpush1.bf16.msra.mxu0 0
  %761 = vmatprep.subr.bf16.mxu0 0
  %762 = vmatpush1.bf16.msra.mxu0 0
  %763 = vmatprep.subr.bf16.mxu0 0
  %764 = vmatpush1.bf16.msra.mxu0 0
  %765 = vmatprep.subr.bf16.mxu0 0
  %766 = vmatpush1.bf16.msra.mxu0 0
  %767 = vmatprep.subr.bf16.mxu0 0
  %768 = vmatpush1.bf16.msra.mxu0 0
  %769 = vmatprep.subr.bf16.mxu0 0
  %770 = vmatpush1.bf16.msra.mxu0 0
  %771 = vmatprep.subr.bf16.mxu0 0
  %772 = vmatpush1.bf16.msra.mxu0 0
  %773 = vmatprep.subr.bf16.mxu0 0
  %774 = vmatpush1.bf16.msra.mxu0 0
  %775 = vmatprep.mubr.bf16.mxu0 0
  %776 = vmatmul.mubr.bf16.gmra.mrb[0].mxu0 %v741
  %v777 = vpop.f32.mrb[0].mxu0
  %v778 = vadd.f32 0.0, %v777
  %v779 = vpop.f32.mrb[0].mxu0
  %v780 = vpop.f32.mrb[0].mxu0
  %v781 = vpop.f32.mrb[0].mxu0
  %782 = vdwg.mxu0
  %v783 = vadd.f32 %v188, %v778
  %v784 = vxor.u32 %v783, 2147483648
  %v785 = vmul.f32 %v784, 1.442695
  %v786 = vpow.pop %v785
  %v787 = vadd.f32 %v786, 1.0
  %v788 = vrcp.pop %v787
  %v789 = vmul.f32 1.0, %v788
  %v790 = vtanh.pop %v783
  %v791 = vmul.f32 %v789, %v729
  %793 = vrot.lane.b32.xlu0 %v790, 64
  %v794 = vpop.permute.xlu0 %793
  %v796 = vmul.f32 %v789, %v794
  %798 = vrot.lane.b32.xlu0 %v796, 32
  %v799 = vpop.permute.xlu0 %798
  %v801 = vadd.f32 %v791, %v799
  %v802 = vtanh.pop %v801
  %804 = vrot.lane.b32.xlu0 %v802, 64
  %v805 = vpop.permute.xlu0 %804
  %v807 = vmul.f32 %v789, %v805
  %v808 = vpack.c.bf16 %v807, %v807
  %810 = vrot.lane.b32.xlu0 %v808, 32
  %v811 = vpop.permute.xlu0 %810
  %v813 = vsel %vm235, %v811, 0
  %815 = vmatprep.subr.bf16.mxu0 0
  %816 = vmatpush1.bf16.msra.mxu0 %v231
  %817 = vmatprep.subr.bf16.mxu0 0
  %818 = vmatpush1.bf16.msra.mxu0 %v232
  %819 = vmatprep.subr.bf16.mxu0 0
  %820 = vmatpush1.bf16.msra.mxu0 0
  %821 = vmatprep.subr.bf16.mxu0 0
  %822 = vmatpush1.bf16.msra.mxu0 0
  %823 = vmatprep.subr.bf16.mxu0 0
  %824 = vmatpush1.bf16.msra.mxu0 0
  %825 = vmatprep.subr.bf16.mxu0 0
  %826 = vmatpush1.bf16.msra.mxu0 0
  %827 = vmatprep.subr.bf16.mxu0 0
  %828 = vmatpush1.bf16.msra.mxu0 0
  %829 = vmatprep.subr.bf16.mxu0 0
  %830 = vmatpush1.bf16.msra.mxu0 0
  %831 = vmatprep.subr.bf16.mxu0 0
  %832 = vmatpush1.bf16.msra.mxu0 0
  %833 = vmatprep.subr.bf16.mxu0 0
  %834 = vmatpush1.bf16.msra.mxu0 0
  %835 = vmatprep.subr.bf16.mxu0 0
  %836 = vmatpush1.bf16.msra.mxu0 0
  %837 = vmatprep.subr.bf16.mxu0 0
  %838 = vmatpush1.bf16.msra.mxu0 0
  %839 = vmatprep.subr.bf16.mxu0 0
  %840 = vmatpush1.bf16.msra.mxu0 0
  %841 = vmatprep.subr.bf16.mxu0 0
  %842 = vmatpush1.bf16.msra.mxu0 0
  %843 = vmatprep.subr.bf16.mxu0 0
  %844 = vmatpush1.bf16.msra.mxu0 0
  %845 = vmatprep.subr.bf16.mxu0 0
  %846 = vmatpush1.bf16.msra.mxu0 0
  %847 = vmatprep.mubr.bf16.mxu0 0
  %848 = vmatmul.mubr.bf16.gmra.mrb[0].mxu0 %v813
  %v849 = vpop.f32.mrb[0].mxu0
  %v850 = vadd.f32 0.0, %v849
  %v851 = vpop.f32.mrb[0].mxu0
  %v852 = vpop.f32.mrb[0].mxu0
  %v853 = vpop.f32.mrb[0].mxu0
  %854 = vdwg.mxu0
  %v855 = vadd.f32 %v193, %v850
  %v856 = vxor.u32 %v855, 2147483648
  %v857 = vmul.f32 %v856, 1.442695
  %v858 = vpow.pop %v857
  %v859 = vadd.f32 %v858, 1.0
  %v860 = vrcp.pop %v859
  %v861 = vmul.f32 1.0, %v860
  %v862 = vtanh.pop %v855
  %v863 = vmul.f32 %v861, %v801
  %865 = vrot.lane.b32.xlu0 %v862, 64
  %v866 = vpop.permute.xlu0 %865
  %v868 = vmul.f32 %v861, %v866
  %870 = vrot.lane.b32.xlu0 %v868, 32
  %v871 = vpop.permute.xlu0 %870
  %v873 = vadd.f32 %v863, %v871
  %v874 = vtanh.pop %v873
  %876 = vrot.lane.b32.xlu0 %v874, 64
  %v877 = vpop.permute.xlu0 %876
  %v879 = vmul.f32 %v861, %v877
  %v880 = vpack.c.bf16 %v879, %v879
  %882 = vrot.lane.b32.xlu0 %v880, 32
  %v883 = vpop.permute.xlu0 %882
  %v885 = vsel %vm235, %v883, 0
  %887 = vmatprep.subr.bf16.mxu0 0
  %888 = vmatpush1.bf16.msra.mxu0 %v231
  %889 = vmatprep.subr.bf16.mxu0 0
  %890 = vmatpush1.bf16.msra.mxu0 %v232
  %891 = vmatprep.subr.bf16.mxu0 0
  %892 = vmatpush1.bf16.msra.mxu0 0
  %893 = vmatprep.subr.bf16.mxu0 0
  %894 = vmatpush1.bf16.msra.mxu0 0
  %895 = vmatprep.subr.bf16.mxu0 0
  %896 = vmatpush1.bf16.msra.mxu0 0
  %897 = vmatprep.subr.bf16.mxu0 0
  %898 = vmatpush1.bf16.msra.mxu0 0
  %899 = vmatprep.subr.bf16.mxu0 0
  %900 = vmatpush1.bf16.msra.mxu0 0
  %901 = vmatprep.subr.bf16.mxu0 0
  %902 = vmatpush1.bf16.msra.mxu0 0
  %903 = vmatprep.subr.bf16.mxu0 0
  %904 = vmatpush1.bf16.msra.mxu0 0
  %905 = vmatprep.subr.bf16.mxu0 0
  %906 = vmatpush1.bf16.msra.mxu0 0
  %907 = vmatprep.subr.bf16.mxu0 0
  %908 = vmatpush1.bf16.msra.mxu0 0
  %909 = vmatprep.subr.bf16.mxu0 0
  %910 = vmatpush1.bf16.msra.mxu0 0
  %911 = vmatprep.subr.bf16.mxu0 0
  %912 = vmatpush1.bf16.msra.mxu0 0
  %913 = vmatprep.subr.bf16.mxu0 0
  %914 = vmatpush1.bf16.msra.mxu0 0
  %915 = vmatprep.subr.bf16.mxu0 0
  %916 = vmatpush1.bf16.msra.mxu0 0
  %917 = vmatprep.subr.bf16.mxu0 0
  %918 = vmatpush1.bf16.msra.mxu0 0
  %919 = vmatprep.mubr.bf16.mxu0 0
  %920 = vmatmul.mubr.bf16.gmra.mrb[0].mxu0 %v885
  %v921 = vpop.f32.mrb[0].mxu0
  %v922 = vadd.f32 0.0, %v921
  %v923 = vpop.f32.mrb[0].mxu0
  %v924 = vpop.f32.mrb[0].mxu0
  %v925 = vpop.f32.mrb[0].mxu0
  %926 = vdwg.mxu0
  %v927 = vadd.f32 %v196, %v922
  %v928 = vxor.u32 %v927, 2147483648
  %v929 = vmul.f32 %v928, 1.442695
  %v930 = vpow.pop %v929
  %v931 = vadd.f32 %v930, 1.0
  %v932 = vrcp.pop %v931
  %v933 = vmul.f32 1.0, %v932
  %v934 = vtanh.pop %v927
  %v935 = vmul.f32 %v933, %v873
  %937 = vrot.lane.b32.xlu0 %v934, 64
  %v938 = vpop.permute.xlu0 %937
  %v940 = vmul.f32 %v933, %v938
  %942 = vrot.lane.b32.xlu0 %v940, 32
  %v943 = vpop.permute.xlu0 %942
  %v945 = vadd.f32 %v935, %v943
  %v946 = vtanh.pop %v945
  %948 = vrot.lane.b32.xlu0 %v946, 64
  %v949 = vpop.permute.xlu0 %948
  %v951 = vmul.f32 %v933, %v949
  %v952 = vpack.c.bf16 %v951, %v951
  %954 = vrot.lane.b32.xlu0 %v952, 32
  %v955 = vpop.permute.xlu0 %954
  %v957 = vsel %vm235, %v955, 0
  %959 = vmatprep.subr.bf16.mxu0 0
  %960 = vmatpush1.bf16.msra.mxu0 %v231
  %961 = vmatprep.subr.bf16.mxu0 0
  %962 = vmatpush1.bf16.msra.mxu0 %v232
  %963 = vmatprep.subr.bf16.mxu0 0
  %964 = vmatpush1.bf16.msra.mxu0 0
  %965 = vmatprep.subr.bf16.mxu0 0
  %966 = vmatpush1.bf16.msra.mxu0 0
  %967 = vmatprep.subr.bf16.mxu0 0
  %968 = vmatpush1.bf16.msra.mxu0 0
  %969 = vmatprep.subr.bf16.mxu0 0
  %970 = vmatpush1.bf16.msra.mxu0 0
  %971 = vmatprep.subr.bf16.mxu0 0
  %972 = vmatpush1.bf16.msra.mxu0 0
  %973 = vmatprep.subr.bf16.mxu0 0
  %974 = vmatpush1.bf16.msra.mxu0 0
  %975 = vmatprep.subr.bf16.mxu0 0
  %976 = vmatpush1.bf16.msra.mxu0 0
  %977 = vmatprep.subr.bf16.mxu0 0
  %978 = vmatpush1.bf16.msra.mxu0 0
  %979 = vmatprep.subr.bf16.mxu0 0
  %980 = vmatpush1.bf16.msra.mxu0 0
  %981 = vmatprep.subr.bf16.mxu0 0
  %982 = vmatpush1.bf16.msra.mxu0 0
  %983 = vmatprep.subr.bf16.mxu0 0
  %984 = vmatpush1.bf16.msra.mxu0 0
  %985 = vmatprep.subr.bf16.mxu0 0
  %986 = vmatpush1.bf16.msra.mxu0 0
  %987 = vmatprep.subr.bf16.mxu0 0
  %988 = vmatpush1.bf16.msra.mxu0 0
  %989 = vmatprep.subr.bf16.mxu0 0
  %990 = vmatpush1.bf16.msra.mxu0 0
  %991 = vmatprep.mubr.bf16.mxu0 0
  %992 = vmatmul.mubr.bf16.gmra.mrb[0].mxu0 %v957
  %v993 = vpop.f32.mrb[0].mxu0
  %v994 = vadd.f32 0.0, %v993
  %v995 = vpop.f32.mrb[0].mxu0
  %v996 = vpop.f32.mrb[0].mxu0
  %v997 = vpop.f32.mrb[0].mxu0
  %998 = vdwg.mxu0
  %v999 = vadd.f32 %v201, %v994
  %v1000 = vxor.u32 %v999, 2147483648
  %v1001 = vmul.f32 %v1000, 1.442695
  %v1002 = vpow.pop %v1001
  %v1003 = vadd.f32 %v1002, 1.0
  %v1004 = vrcp.pop %v1003
  %v1005 = vmul.f32 1.0, %v1004
  %v1006 = vtanh.pop %v999
  %v1007 = vmul.f32 %v1005, %v945
  %1009 = vrot.lane.b32.xlu0 %v1006, 64
  %v1010 = vpop.permute.xlu0 %1009
  %v1012 = vmul.f32 %v1005, %v1010
  %1014 = vrot.lane.b32.xlu0 %v1012, 32
  %v1015 = vpop.permute.xlu0 %1014
  %v1017 = vadd.f32 %v1007, %v1015
  %v1018 = vtanh.pop %v1017
  %1020 = vrot.lane.b32.xlu0 %v1018, 64
  %v1021 = vpop.permute.xlu0 %1020
  %v1023 = vmul.f32 %v1005, %v1021
  %v1024 = vpack.c.bf16 %v1023, %v1023
  %1026 = vrot.lane.b32.xlu0 %v1024, 32
  %v1027 = vpop.permute.xlu0 %1026
  %v1029 = vsel %vm235, %v1027, 0
  %1031 = vmatprep.subr.bf16.mxu0 0
  %1032 = vmatpush1.bf16.msra.mxu0 %v231
  %1033 = vmatprep.subr.bf16.mxu0 0
  %1034 = vmatpush1.bf16.msra.mxu0 %v232
  %1035 = vmatprep.subr.bf16.mxu0 0
  %1036 = vmatpush1.bf16.msra.mxu0 0
  %1037 = vmatprep.subr.bf16.mxu0 0
  %1038 = vmatpush1.bf16.msra.mxu0 0
  %1039 = vmatprep.subr.bf16.mxu0 0
  %1040 = vmatpush1.bf16.msra.mxu0 0
  %1041 = vmatprep.subr.bf16.mxu0 0
  %1042 = vmatpush1.bf16.msra.mxu0 0
  %1043 = vmatprep.subr.bf16.mxu0 0
  %1044 = vmatpush1.bf16.msra.mxu0 0
  %1045 = vmatprep.subr.bf16.mxu0 0
  %1046 = vmatpush1.bf16.msra.mxu0 0
  %1047 = vmatprep.subr.bf16.mxu0 0
  %1048 = vmatpush1.bf16.msra.mxu0 0
  %1049 = vmatprep.subr.bf16.mxu0 0
  %1050 = vmatpush1.bf16.msra.mxu0 0
  %1051 = vmatprep.subr.bf16.mxu0 0
  %1052 = vmatpush1.bf16.msra.mxu0 0
  %1053 = vmatprep.subr.bf16.mxu0 0
  %1054 = vmatpush1.bf16.msra.mxu0 0
  %1055 = vmatprep.subr.bf16.mxu0 0
  %1056 = vmatpush1.bf16.msra.mxu0 0
  %1057 = vmatprep.subr.bf16.mxu0 0
  %1058 = vmatpush1.bf16.msra.mxu0 0
  %1059 = vmatprep.subr.bf16.mxu0 0
  %1060 = vmatpush1.bf16.msra.mxu0 0
  %1061 = vmatprep.subr.bf16.mxu0 0
  %1062 = vmatpush1.bf16.msra.mxu0 0
  %1063 = vmatprep.mubr.bf16.mxu0 0
  %1064 = vmatmul.mubr.bf16.gmra.mrb[0].mxu0 %v1029
  %v1065 = vpop.f32.mrb[0].mxu0
  %v1066 = vadd.f32 0.0, %v1065
  %v1067 = vpop.f32.mrb[0].mxu0
  %v1068 = vpop.f32.mrb[0].mxu0
  %v1069 = vpop.f32.mrb[0].mxu0
  %1070 = vdwg.mxu0
  %v1071 = vadd.f32 %v204, %v1066
  %v1072 = vxor.u32 %v1071, 2147483648
  %v1073 = vmul.f32 %v1072, 1.442695
  %v1074 = vpow.pop %v1073
  %v1075 = vadd.f32 %v1074, 1.0
  %v1076 = vrcp.pop %v1075
  %v1077 = vmul.f32 1.0, %v1076
  %v1078 = vtanh.pop %v1071
  %v1079 = vmul.f32 %v1077, %v1017
  %1081 = vrot.lane.b32.xlu0 %v1078, 64
  %v1082 = vpop.permute.xlu0 %1081
  %v1084 = vmul.f32 %v1077, %v1082
  %1086 = vrot.lane.b32.xlu0 %v1084, 32
  %v1087 = vpop.permute.xlu0 %1086
  %v1089 = vadd.f32 %v1079, %v1087
  %v1090 = vtanh.pop %v1089
  %1092 = vrot.lane.b32.xlu0 %v1090, 64
  %v1093 = vpop.permute.xlu0 %1092
  %v1095 = vmul.f32 %v1077, %v1093
  %v1096 = vpack.c.bf16 %v1095, %v1095
  %1098 = vrot.lane.b32.xlu0 %v1096, 32
  %v1099 = vpop.permute.xlu0 %1098
  %v1101 = vsel %vm235, %v1099, 0
  %1103 = vmatprep.subr.bf16.mxu0 0
  %1104 = vmatpush1.bf16.msra.mxu0 %v231
  %1105 = vmatprep.subr.bf16.mxu0 0
  %1106 = vmatpush1.bf16.msra.mxu0 %v232
  %1107 = vmatprep.subr.bf16.mxu0 0
  %1108 = vmatpush1.bf16.msra.mxu0 0
  %1109 = vmatprep.subr.bf16.mxu0 0
  %1110 = vmatpush1.bf16.msra.mxu0 0
  %1111 = vmatprep.subr.bf16.mxu0 0
  %1112 = vmatpush1.bf16.msra.mxu0 0
  %1113 = vmatprep.subr.bf16.mxu0 0
  %1114 = vmatpush1.bf16.msra.mxu0 0
  %1115 = vmatprep.subr.bf16.mxu0 0
  %1116 = vmatpush1.bf16.msra.mxu0 0
  %1117 = vmatprep.subr.bf16.mxu0 0
  %1118 = vmatpush1.bf16.msra.mxu0 0
  %1119 = vmatprep.subr.bf16.mxu0 0
  %1120 = vmatpush1.bf16.msra.mxu0 0
  %1121 = vmatprep.subr.bf16.mxu0 0
  %1122 = vmatpush1.bf16.msra.mxu0 0
  %1123 = vmatprep.subr.bf16.mxu0 0
  %1124 = vmatpush1.bf16.msra.mxu0 0
  %1125 = vmatprep.subr.bf16.mxu0 0
  %1126 = vmatpush1.bf16.msra.mxu0 0
  %1127 = vmatprep.subr.bf16.mxu0 0
  %1128 = vmatpush1.bf16.msra.mxu0 0
  %1129 = vmatprep.subr.bf16.mxu0 0
  %1130 = vmatpush1.bf16.msra.mxu0 0
  %1131 = vmatprep.subr.bf16.mxu0 0
  %1132 = vmatpush1.bf16.msra.mxu0 0
  %1133 = vmatprep.subr.bf16.mxu0 0
  %1134 = vmatpush1.bf16.msra.mxu0 0
  %1135 = vmatprep.mubr.bf16.mxu0 0
  %1136 = vmatmul.mubr.bf16.gmra.mrb[0].mxu0 %v1101
  %v1137 = vpop.f32.mrb[0].mxu0
  %v1138 = vadd.f32 0.0, %v1137
  %v1139 = vpop.f32.mrb[0].mxu0
  %v1140 = vpop.f32.mrb[0].mxu0
  %v1141 = vpop.f32.mrb[0].mxu0
  %1142 = vdwg.mxu0
  %v1143 = vadd.f32 %v209, %v1138
  %v1144 = vxor.u32 %v1143, 2147483648
  %v1145 = vmul.f32 %v1144, 1.442695
  %v1146 = vpow.pop %v1145
  %v1147 = vadd.f32 %v1146, 1.0
  %v1148 = vrcp.pop %v1147
  %v1149 = vmul.f32 1.0, %v1148
  %v1150 = vtanh.pop %v1143
  %v1151 = vmul.f32 %v1149, %v1089
  %1153 = vrot.lane.b32.xlu0 %v1150, 64
  %v1154 = vpop.permute.xlu0 %1153
  %v1156 = vmul.f32 %v1149, %v1154
  %1158 = vrot.lane.b32.xlu0 %v1156, 32
  %v1159 = vpop.permute.xlu0 %1158
  %v1161 = vadd.f32 %v1151, %v1159
  %v1162 = vtanh.pop %v1161
  %1164 = vrot.lane.b32.xlu0 %v1162, 64
  %v1165 = vpop.permute.xlu0 %1164
  %v1167 = vmul.f32 %v1149, %v1165
  %v1168 = vpack.c.bf16 %v1167, %v1167
  %1170 = vrot.lane.b32.xlu0 %v1168, 32
  %v1171 = vpop.permute.xlu0 %1170
  %v1173 = vsel %vm235, %v1171, 0
  %1175 = vmatprep.subr.bf16.mxu0 0
  %1176 = vmatpush1.bf16.msra.mxu0 %v231
  %1177 = vmatprep.subr.bf16.mxu0 0
  %1178 = vmatpush1.bf16.msra.mxu0 %v232
  %1179 = vmatprep.subr.bf16.mxu0 0
  %1180 = vmatpush1.bf16.msra.mxu0 0
  %1181 = vmatprep.subr.bf16.mxu0 0
  %1182 = vmatpush1.bf16.msra.mxu0 0
  %1183 = vmatprep.subr.bf16.mxu0 0
  %1184 = vmatpush1.bf16.msra.mxu0 0
  %1185 = vmatprep.subr.bf16.mxu0 0
  %1186 = vmatpush1.bf16.msra.mxu0 0
  %1187 = vmatprep.subr.bf16.mxu0 0
  %1188 = vmatpush1.bf16.msra.mxu0 0
  %1189 = vmatprep.subr.bf16.mxu0 0
  %1190 = vmatpush1.bf16.msra.mxu0 0
  %1191 = vmatprep.subr.bf16.mxu0 0
  %1192 = vmatpush1.bf16.msra.mxu0 0
  %1193 = vmatprep.subr.bf16.mxu0 0
  %1194 = vmatpush1.bf16.msra.mxu0 0
  %1195 = vmatprep.subr.bf16.mxu0 0
  %1196 = vmatpush1.bf16.msra.mxu0 0
  %1197 = vmatprep.subr.bf16.mxu0 0
  %1198 = vmatpush1.bf16.msra.mxu0 0
  %1199 = vmatprep.subr.bf16.mxu0 0
  %1200 = vmatpush1.bf16.msra.mxu0 0
  %1201 = vmatprep.subr.bf16.mxu0 0
  %1202 = vmatpush1.bf16.msra.mxu0 0
  %1203 = vmatprep.subr.bf16.mxu0 0
  %1204 = vmatpush1.bf16.msra.mxu0 0
  %1205 = vmatprep.subr.bf16.mxu0 0
  %1206 = vmatpush1.bf16.msra.mxu0 0
  %1207 = vmatprep.mubr.bf16.mxu0 0
  %1208 = vmatmul.mubr.bf16.gmra.mrb[0].mxu0 %v1173
  %v1209 = vpop.f32.mrb[0].mxu0
  %v1210 = vadd.f32 0.0, %v1209
  %v1211 = vpop.f32.mrb[0].mxu0
  %v1212 = vpop.f32.mrb[0].mxu0
  %v1213 = vpop.f32.mrb[0].mxu0
  %1214 = vdwg.mxu0
  %v1215 = vadd.f32 %v212, %v1210
  %v1216 = vxor.u32 %v1215, 2147483648
  %v1217 = vmul.f32 %v1216, 1.442695
  %v1218 = vpow.pop %v1217
  %v1219 = vadd.f32 %v1218, 1.0
  %v1220 = vrcp.pop %v1219
  %v1221 = vmul.f32 1.0, %v1220
  %v1222 = vtanh.pop %v1215
  %v1223 = vmul.f32 %v1221, %v1161
  %1225 = vrot.lane.b32.xlu0 %v1222, 64
  %v1226 = vpop.permute.xlu0 %1225
  %v1228 = vmul.f32 %v1221, %v1226
  %1230 = vrot.lane.b32.xlu0 %v1228, 32
  %v1231 = vpop.permute.xlu0 %1230
  %v1233 = vadd.f32 %v1223, %v1231
  %v1234 = vtanh.pop %v1233
  %1236 = vrot.lane.b32.xlu0 %v1234, 64
  %v1237 = vpop.permute.xlu0 %1236
  %v1239 = vmul.f32 %v1221, %v1237
  %v1240 = vpack.c.bf16 %v1239, %v1239
  %1242 = vrot.lane.b32.xlu0 %v1240, 32
  %v1243 = vpop.permute.xlu0 %1242
  %v1245 = vsel %vm235, %v1243, 0
  %1247 = vmatprep.subr.bf16.mxu0 0
  %1248 = vmatpush1.bf16.msra.mxu0 %v231
  %1249 = vmatprep.subr.bf16.mxu0 0
  %1250 = vmatpush1.bf16.msra.mxu0 %v232
  %1251 = vmatprep.subr.bf16.mxu0 0
  %1252 = vmatpush1.bf16.msra.mxu0 0
  %1253 = vmatprep.subr.bf16.mxu0 0
  %1254 = vmatpush1.bf16.msra.mxu0 0
  %1255 = vmatprep.subr.bf16.mxu0 0
  %1256 = vmatpush1.bf16.msra.mxu0 0
  %1257 = vmatprep.subr.bf16.mxu0 0
  %1258 = vmatpush1.bf16.msra.mxu0 0
  %1259 = vmatprep.subr.bf16.mxu0 0
  %1260 = vmatpush1.bf16.msra.mxu0 0
  %1261 = vmatprep.subr.bf16.mxu0 0
  %1262 = vmatpush1.bf16.msra.mxu0 0
  %1263 = vmatprep.subr.bf16.mxu0 0
  %1264 = vmatpush1.bf16.msra.mxu0 0
  %1265 = vmatprep.subr.bf16.mxu0 0
  %1266 = vmatpush1.bf16.msra.mxu0 0
  %1267 = vmatprep.subr.bf16.mxu0 0
  %1268 = vmatpush1.bf16.msra.mxu0 0
  %1269 = vmatprep.subr.bf16.mxu0 0
  %1270 = vmatpush1.bf16.msra.mxu0 0
  %1271 = vmatprep.subr.bf16.mxu0 0
  %1272 = vmatpush1.bf16.msra.mxu0 0
  %1273 = vmatprep.subr.bf16.mxu0 0
  %1274 = vmatpush1.bf16.msra.mxu0 0
  %1275 = vmatprep.subr.bf16.mxu0 0
  %1276 = vmatpush1.bf16.msra.mxu0 0
  %1277 = vmatprep.subr.bf16.mxu0 0
  %1278 = vmatpush1.bf16.msra.mxu0 0
  %1279 = vmatprep.mubr.bf16.mxu0 0
  %1280 = vmatmul.mubr.bf16.gmra.mrb[0].mxu0 %v1245
  %v1281 = vpop.f32.mrb[0].mxu0
  %v1282 = vadd.f32 0.0, %v1281
  %v1283 = vpop.f32.mrb[0].mxu0
  %v1284 = vpop.f32.mrb[0].mxu0
  %v1285 = vpop.f32.mrb[0].mxu0
  %1286 = vdwg.mxu0
  %v1287 = vadd.f32 %v217, %v1282
  %v1288 = vxor.u32 %v1287, 2147483648
  %v1289 = vmul.f32 %v1288, 1.442695
  %v1290 = vpow.pop %v1289
  %v1291 = vadd.f32 %v1290, 1.0
  %v1292 = vrcp.pop %v1291
  %v1293 = vmul.f32 1.0, %v1292
  %v1294 = vtanh.pop %v1287
  %v1295 = vmul.f32 %v1293, %v1233
  %1297 = vrot.lane.b32.xlu0 %v1294, 64
  %v1298 = vpop.permute.xlu0 %1297
  %v1300 = vmul.f32 %v1293, %v1298
  %1302 = vrot.lane.b32.xlu0 %v1300, 32
  %v1303 = vpop.permute.xlu0 %1302
  %v1305 = vadd.f32 %v1295, %v1303
  %v1306 = vtanh.pop %v1305
  %1308 = vrot.lane.b32.xlu0 %v1306, 64
  %v1309 = vpop.permute.xlu0 %1308
  %v1311 = vmul.f32 %v1293, %v1309
  %v1312 = vpack.c.bf16 %v1311, %v1311
  %1314 = vrot.lane.b32.xlu0 %v1312, 32
  %v1315 = vpop.permute.xlu0 %1314
  %v1317 = vsel %vm235, %v1315, 0
  %1319 = vmatprep.subr.bf16.mxu0 0
  %1320 = vmatpush1.bf16.msra.mxu0 %v231
  %1321 = vmatprep.subr.bf16.mxu0 0
  %1322 = vmatpush1.bf16.msra.mxu0 %v232
  %1323 = vmatprep.subr.bf16.mxu0 0
  %1324 = vmatpush1.bf16.msra.mxu0 0
  %1325 = vmatprep.subr.bf16.mxu0 0
  %1326 = vmatpush1.bf16.msra.mxu0 0
  %1327 = vmatprep.subr.bf16.mxu0 0
  %1328 = vmatpush1.bf16.msra.mxu0 0
  %1329 = vmatprep.subr.bf16.mxu0 0
  %1330 = vmatpush1.bf16.msra.mxu0 0
  %1331 = vmatprep.subr.bf16.mxu0 0
  %1332 = vmatpush1.bf16.msra.mxu0 0
  %1333 = vmatprep.subr.bf16.mxu0 0
  %1334 = vmatpush1.bf16.msra.mxu0 0
  %1335 = vmatprep.subr.bf16.mxu0 0
  %1336 = vmatpush1.bf16.msra.mxu0 0
  %1337 = vmatprep.subr.bf16.mxu0 0
  %1338 = vmatpush1.bf16.msra.mxu0 0
  %1339 = vmatprep.subr.bf16.mxu0 0
  %1340 = vmatpush1.bf16.msra.mxu0 0
  %1341 = vmatprep.subr.bf16.mxu0 0
  %1342 = vmatpush1.bf16.msra.mxu0 0
  %1343 = vmatprep.subr.bf16.mxu0 0
  %1344 = vmatpush1.bf16.msra.mxu0 0
  %1345 = vmatprep.subr.bf16.mxu0 0
  %1346 = vmatpush1.bf16.msra.mxu0 0
  %1347 = vmatprep.subr.bf16.mxu0 0
  %1348 = vmatpush1.bf16.msra.mxu0 0
  %1349 = vmatprep.subr.bf16.mxu0 0
  %1350 = vmatpush1.bf16.msra.mxu0 0
  %1351 = vmatprep.mubr.bf16.mxu0 0
  %1352 = vmatmul.mubr.bf16.gmra.mrb[0].mxu0 %v1317
  %v1353 = vpop.f32.mrb[0].mxu0
  %v1354 = vadd.f32 0.0, %v1353
  %v1355 = vpop.f32.mrb[0].mxu0
  %v1356 = vpop.f32.mrb[0].mxu0
  %v1357 = vpop.f32.mrb[0].mxu0
  %1358 = vdwg.mxu0
  %v1359 = vadd.f32 %v220, %v1354
  %v1360 = vxor.u32 %v1359, 2147483648
  %v1361 = vmul.f32 %v1360, 1.442695
  %v1362 = vpow.pop %v1361
  %v1363 = vadd.f32 %v1362, 1.0
  %v1364 = vrcp.pop %v1363
  %v1365 = vmul.f32 1.0, %v1364
  %v1366 = vtanh.pop %v1359
  %v1367 = vmul.f32 %v1365, %v1305
  %1369 = vrot.lane.b32.xlu0 %v1366, 64
  %v1370 = vpop.permute.xlu0 %1369
  %v1372 = vmul.f32 %v1365, %v1370
  %1374 = vrot.lane.b32.xlu0 %v1372, 32
  %v1375 = vpop.permute.xlu0 %1374
  %v1377 = vadd.f32 %v1367, %v1375
  %v1378 = vtanh.pop %v1377
  %1380 = vrot.lane.b32.xlu0 %v1378, 64
  %v1381 = vpop.permute.xlu0 %1380
  %v1383 = vmul.f32 %v1365, %v1381
  %v1384 = vlaneseq
  %v1385 = vshrl.u32 %v1384, 7
  %v1386 = vsub.s32 0, %v1385
  %v1387 = vrot.slane %v34, %v1386
  %1389 = vrot.lane.b32.xlu0 %v1383, 32
  %v1390 = vpop.permute.xlu0 %1389
  %v1391 = vsel %vm235, %v1390, 0
  %1393 = vmatprep.subr.mxu0 0.0
  %1394 = vmatpush1.msra.mxu0 %v27
  %1395 = vmatprep.subr.mxu0 0.0
  %1396 = vmatpush1.msra.mxu0 %v28
  %1397 = vmatprep.subr.mxu0 0.0
  %1398 = vmatpush1.msra.mxu0 %v29
  %1399 = vmatprep.subr.mxu0 0.0
  %1400 = vmatpush1.msra.mxu0 %v30
  %1401 = vmatprep.subr.mxu0 0.0
  %1402 = vmatpush1.msra.mxu0 0.0
  %1403 = vmatprep.subr.mxu0 0.0
  %1404 = vmatpush1.msra.mxu0 0.0
  %1405 = vmatprep.subr.mxu0 0.0
  %1406 = vmatpush1.msra.mxu0 0.0
  %1407 = vmatprep.subr.mxu0 0.0
  %1408 = vmatpush1.msra.mxu0 0.0
  %1409 = vmatprep.subr.mxu0 0.0
  %1410 = vmatpush1.msra.mxu0 0.0
  %1411 = vmatprep.subr.mxu0 0.0
  %1412 = vmatpush1.msra.mxu0 0.0
  %1413 = vmatprep.subr.mxu0 0.0
  %1414 = vmatpush1.msra.mxu0 0.0
  %1415 = vmatprep.subr.mxu0 0.0
  %1416 = vmatpush1.msra.mxu0 0.0
  %1417 = vmatprep.subr.mxu0 0.0
  %1418 = vmatpush1.msra.mxu0 0.0
  %1419 = vmatprep.subr.mxu0 0.0
  %1420 = vmatpush1.msra.mxu0 0.0
  %1421 = vmatprep.subr.mxu0 0.0
  %1422 = vmatpush1.msra.mxu0 0.0
  %1423 = vmatprep.subr.mxu0 0.0
  %1424 = vmatpush1.msra.mxu0 0.0
  %1425 = vmatprep.subr.mxu0 0.0
  %1426 = vmatpush1.msra.mxu0 0.0
  %1427 = vmatprep.subr.mxu0 0.0
  %1428 = vmatpush1.msra.mxu0 0.0
  %1429 = vmatprep.subr.mxu0 0.0
  %1430 = vmatpush1.msra.mxu0 0.0
  %1431 = vmatprep.subr.mxu0 0.0
  %1432 = vmatpush1.msra.mxu0 0.0
  %1433 = vmatprep.subr.mxu0 0.0
  %1434 = vmatpush1.msra.mxu0 0.0
  %1435 = vmatprep.subr.mxu0 0.0
  %1436 = vmatpush1.msra.mxu0 0.0
  %1437 = vmatprep.subr.mxu0 0.0
  %1438 = vmatpush1.msra.mxu0 0.0
  %1439 = vmatprep.subr.mxu0 0.0
  %1440 = vmatpush1.msra.mxu0 0.0
  %1441 = vmatprep.subr.mxu0 0.0
  %1442 = vmatpush1.msra.mxu0 0.0
  %1443 = vmatprep.subr.mxu0 0.0
  %1444 = vmatpush1.msra.mxu0 0.0
  %1445 = vmatprep.subr.mxu0 0.0
  %1446 = vmatpush1.msra.mxu0 0.0
  %1447 = vmatprep.subr.mxu0 0.0
  %1448 = vmatpush1.msra.mxu0 0.0
  %1449 = vmatprep.subr.mxu0 0.0
  %1450 = vmatpush1.msra.mxu0 0.0
  %1451 = vmatprep.subr.mxu0 0.0
  %1452 = vmatpush1.msra.mxu0 0.0
  %1453 = vmatprep.subr.mxu0 0.0
  %1454 = vmatpush1.msra.mxu0 0.0
  %1455 = vmatprep.subr.mxu0 0.0
  %1456 = vmatpush1.msra.mxu0 0.0
  %1457 = vmatprep.mubr.f32.mxu0 0.0
  %1458 = vmatmul.mubr.f32.gmra.mrb[0].mxu0 %v1391
  %v1459 = vpop.f32.mrb[0].mxu0
  %v1460 = vadd.f32 %v1387, %v1459
  %v1461 = vpop.f32.mrb[0].mxu0
  %1462 = vdwg.mxu0
  %v1463 = vmul.f32 %v1460, 0.5
  %v1464 = vmul.f32 %v1463, 1.442695
  %v1465 = vpow.pop %v1464
  %v1466 = vld [vmem:[%s1] sm:$0xff]
  %1468 = vrot.lane.b32.xlu0 %v1465, 124
  %v1469 = vpop.permute.xlu0 %1468
  %v1471 = vmul.f32 %v1466, %v1469
  %v1472 = vadd.f32 %v1460, %v1471
  %v1473 = vpack.c.bf16 %v1472, %v1472
  %v1474 = vlaneseq
  %v1475 = vshrl.u32 %v1474, 7
  %v1476 = vsub.s32 0, %v1475
  %v1477 = vrot.slane %v35, %v1476
  %vm1478 = vcmask 31744
  %v1480 = vsel %vm1478, %v1473, 0
  %vm1482 = vcmask 1041408
  %v1484 = vsel %vm1482, %v24, 0
  %1486 = vmatprep.subr.bf16.mxu0 0
  %1487 = vmatpush1.bf16.msra.mxu0 %v1484
  %1488 = vmatprep.subr.bf16.mxu0 0
  %1489 = vmatpush1.bf16.msra.mxu0 0
  %1490 = vmatprep.subr.bf16.mxu0 0
  %1491 = vmatpush1.bf16.msra.mxu0 0
  %1492 = vmatprep.subr.bf16.mxu0 0
  %1493 = vmatpush1.bf16.msra.mxu0 0
  %1494 = vmatprep.subr.bf16.mxu0 0
  %1495 = vmatpush1.bf16.msra.mxu0 0
  %1496 = vmatprep.subr.bf16.mxu0 0
  %1497 = vmatpush1.bf16.msra.mxu0 0
  %1498 = vmatprep.subr.bf16.mxu0 0
  %1499 = vmatpush1.bf16.msra.mxu0 0
  %1500 = vmatprep.subr.bf16.mxu0 0
  %1501 = vmatpush1.bf16.msra.mxu0 0
  %1502 = vmatprep.subr.bf16.mxu0 0
  %1503 = vmatpush1.bf16.msra.mxu0 0
  %1504 = vmatprep.subr.bf16.mxu0 0
  %1505 = vmatpush1.bf16.msra.mxu0 0
  %1506 = vmatprep.subr.bf16.mxu0 0
  %1507 = vmatpush1.bf16.msra.mxu0 0
  %1508 = vmatprep.subr.bf16.mxu0 0
  %1509 = vmatpush1.bf16.msra.mxu0 0
  %1510 = vmatprep.subr.bf16.mxu0 0
  %1511 = vmatpush1.bf16.msra.mxu0 0
  %1512 = vmatprep.subr.bf16.mxu0 0
  %1513 = vmatpush1.bf16.msra.mxu0 0
  %1514 = vmatprep.subr.bf16.mxu0 0
  %1515 = vmatpush1.bf16.msra.mxu0 0
  %1516 = vmatprep.subr.bf16.mxu0 0
  %1517 = vmatpush1.bf16.msra.mxu0 0
  %1518 = vmatprep.mubr.bf16.mxu0 0
  %1519 = vmatmul.mubr.bf16.gmra.mrb[0].mxu0 %v1480
  %v1520 = vpop.f32.mrb[0].mxu0
  %v1521 = vadd.f32 %v1477, %v1520
  %v1522 = vpop.f32.mrb[0].mxu0
  %v1523 = vpop.f32.mrb[0].mxu0
  %v1524 = vpop.f32.mrb[0].mxu0
  %1525 = vdwg.mxu0
  %v1527 = vsel %vm122, %v23, 0
  %1529 = vmatprep.subr.bf16.mxu0 0
  %1530 = vmatpush1.bf16.msra.mxu0 %v1527
  %1531 = vmatprep.subr.bf16.mxu0 0
  %1532 = vmatpush1.bf16.msra.mxu0 0
  %1533 = vmatprep.subr.bf16.mxu0 0
  %1534 = vmatpush1.bf16.msra.mxu0 0
  %1535 = vmatprep.subr.bf16.mxu0 0
  %1536 = vmatpush1.bf16.msra.mxu0 0
  %1537 = vmatprep.subr.bf16.mxu0 0
  %1538 = vmatpush1.bf16.msra.mxu0 0
  %1539 = vmatprep.subr.bf16.mxu0 0
  %1540 = vmatpush1.bf16.msra.mxu0 0
  %1541 = vmatprep.subr.bf16.mxu0 0
  %1542 = vmatpush1.bf16.msra.mxu0 0
  %1543 = vmatprep.subr.bf16.mxu0 0
  %1544 = vmatpush1.bf16.msra.mxu0 0
  %1545 = vmatprep.subr.bf16.mxu0 0
  %1546 = vmatpush1.bf16.msra.mxu0 0
  %1547 = vmatprep.subr.bf16.mxu0 0
  %1548 = vmatpush1.bf16.msra.mxu0 0
  %1549 = vmatprep.subr.bf16.mxu0 0
  %1550 = vmatpush1.bf16.msra.mxu0 0
  %1551 = vmatprep.subr.bf16.mxu0 0
  %1552 = vmatpush1.bf16.msra.mxu0 0
  %1553 = vmatprep.subr.bf16.mxu0 0
  %1554 = vmatpush1.bf16.msra.mxu0 0
  %1555 = vmatprep.subr.bf16.mxu0 0
  %1556 = vmatpush1.bf16.msra.mxu0 0
  %1557 = vmatprep.subr.bf16.mxu0 0
  %1558 = vmatpush1.bf16.msra.mxu0 0
  %1559 = vmatprep.subr.bf16.mxu0 0
  %1560 = vmatpush1.bf16.msra.mxu0 0
  %1561 = vmatprep.mubr.bf16.mxu0 0
  %1562 = vmatmul.mubr.bf16.gmra.mrb[0].mxu0 %v99
  %v1563 = vpop.f32.mrb[0].mxu0
  %v1564 = vadd.f32 0.0, %v1563
  %v1565 = vpop.f32.mrb[0].mxu0
  %v1566 = vpop.f32.mrb[0].mxu0
  %v1567 = vadd.f32 0.0, %v1566
  %v1568 = vpop.f32.mrb[0].mxu0
  %1569 = vmatprep.mubr.bf16.mxu0 0
  %1570 = vmatmul.mubr.bf16.gmra.mrb[0].mxu0 %v102
  %v1571 = vpop.f32.mrb[0].mxu0
  %v1572 = vadd.f32 0.0, %v1571
  %v1573 = vpop.f32.mrb[0].mxu0
  %v1574 = vpop.f32.mrb[0].mxu0
  %v1575 = vadd.f32 0.0, %v1574
  %v1576 = vpop.f32.mrb[0].mxu0
  %1577 = vmatprep.mubr.bf16.mxu0 0
  %1578 = vmatmul.mubr.bf16.gmra.mrb[0].mxu0 %v105
  %v1579 = vpop.f32.mrb[0].mxu0
  %v1580 = vadd.f32 0.0, %v1579
  %v1581 = vpop.f32.mrb[0].mxu0
  %v1582 = vpop.f32.mrb[0].mxu0
  %v1583 = vadd.f32 0.0, %v1582
  %v1584 = vpop.f32.mrb[0].mxu0
  %1585 = vmatprep.mubr.bf16.mxu0 0
  %1586 = vmatmul.mubr.bf16.gmra.mrb[0].mxu0 %v108
  %v1587 = vpop.f32.mrb[0].mxu0
  %v1588 = vadd.f32 0.0, %v1587
  %v1589 = vpop.f32.mrb[0].mxu0
  %v1590 = vpop.f32.mrb[0].mxu0
  %v1591 = vadd.f32 0.0, %v1590
  %v1592 = vpop.f32.mrb[0].mxu0
  %1593 = vdwg.mxu0
  %v1594 = vadd.f32 %v1564, %v1521
  %v1597 = vunpack.c.l.b16 %v25
  %v1598 = vunpack.c.l.b16 %v26
  %v1599 = vpack.c.b16 %v1598, %v1597
  %vm1601 = vcmask 130048
  %v1602 = vsel %vm1601, 0, 0
  %1604 = vmatprep.subr.bf16.mxu0 0
  %1605 = vmatpush1.bf16.msra.mxu0 %v1599
  %1606 = vmatprep.subr.bf16.mxu0 0
  %1607 = vmatpush1.bf16.msra.mxu0 0
  %1608 = vmatprep.subr.bf16.mxu0 0
  %1609 = vmatpush1.bf16.msra.mxu0 0
  %1610 = vmatprep.subr.bf16.mxu0 0
  %1611 = vmatpush1.bf16.msra.mxu0 0
  %1612 = vmatprep.subr.bf16.mxu0 0
  %1613 = vmatpush1.bf16.msra.mxu0 0
  %1614 = vmatprep.subr.bf16.mxu0 0
  %1615 = vmatpush1.bf16.msra.mxu0 0
  %1616 = vmatprep.subr.bf16.mxu0 0
  %1617 = vmatpush1.bf16.msra.mxu0 0
  %1618 = vmatprep.subr.bf16.mxu0 0
  %1619 = vmatpush1.bf16.msra.mxu0 0
  %1620 = vmatprep.subr.bf16.mxu0 0
  %1621 = vmatpush1.bf16.msra.mxu0 0
  %1622 = vmatprep.subr.bf16.mxu0 0
  %1623 = vmatpush1.bf16.msra.mxu0 0
  %1624 = vmatprep.subr.bf16.mxu0 0
  %1625 = vmatpush1.bf16.msra.mxu0 0
  %1626 = vmatprep.subr.bf16.mxu0 0
  %1627 = vmatpush1.bf16.msra.mxu0 0
  %1628 = vmatprep.subr.bf16.mxu0 0
  %1629 = vmatpush1.bf16.msra.mxu0 0
  %1630 = vmatprep.subr.bf16.mxu0 0
  %1631 = vmatpush1.bf16.msra.mxu0 0
  %1632 = vmatprep.subr.bf16.mxu0 0
  %1633 = vmatpush1.bf16.msra.mxu0 0
  %1634 = vmatprep.subr.bf16.mxu0 0
  %1635 = vmatpush1.bf16.msra.mxu0 0
  %1636 = vmatprep.mubr.bf16.mxu0 0
  %1637 = vmatmul.mubr.bf16.gmra.mrb[0].mxu0 %v1602
  %v1638 = vpop.f32.mrb[0].mxu0
  %v1639 = vadd.f32 0.0, %v1638
  %v1640 = vpop.f32.mrb[0].mxu0
  %v1641 = vpop.f32.mrb[0].mxu0
  %v1642 = vpop.f32.mrb[0].mxu0
  %1643 = vdwg.mxu0
  %v1644 = vadd.f32 %v1594, %v1639
  %v1645 = vxor.u32 %v1644, 2147483648
  %v1646 = vmul.f32 %v1645, 1.442695
  %v1647 = vpow.pop %v1646
  %v1648 = vadd.f32 %v1647, 1.0
  %v1649 = vrcp.pop %v1648
  %v1650 = vmul.f32 1.0, %v1649
  %v1651 = vtanh.pop %v1644
  %v1652 = vmul.f32 %v1650, 0.0
  %1654 = vrot.lane.b32.xlu0 %v1651, 96
  %v1655 = vpop.permute.xlu0 %1654
  %v1657 = vmul.f32 %v1650, %v1655
  %1659 = vrot.lane.b32.xlu0 %v1657, 16
  %v1660 = vpop.permute.xlu0 %1659
  %v1662 = vadd.f32 %v1652, %v1660
  %v1663 = vtanh.pop %v1662
  %1665 = vrot.lane.b32.xlu0 %v1663, 32
  %v1666 = vpop.permute.xlu0 %1665
  %v1668 = vmul.f32 %v1650, %v1666
  %v1669 = vadd.f32 %v1567, %v1521
  %v1670 = vpack.c.bf16 %v1668, %v1668
  %1672 = vrot.lane.b32.xlu0 %v1670, 80
  %v1673 = vpop.permute.xlu0 %1672
  %v1675 = vsel %vm1601, %v1673, 0
  %1677 = vmatprep.subr.bf16.mxu0 0
  %1678 = vmatpush1.bf16.msra.mxu0 %v1599
  %1679 = vmatprep.subr.bf16.mxu0 0
  %1680 = vmatpush1.bf16.msra.mxu0 0
  %1681 = vmatprep.subr.bf16.mxu0 0
  %1682 = vmatpush1.bf16.msra.mxu0 0
  %1683 = vmatprep.subr.bf16.mxu0 0
  %1684 = vmatpush1.bf16.msra.mxu0 0
  %1685 = vmatprep.subr.bf16.mxu0 0
  %1686 = vmatpush1.bf16.msra.mxu0 0
  %1687 = vmatprep.subr.bf16.mxu0 0
  %1688 = vmatpush1.bf16.msra.mxu0 0
  %1689 = vmatprep.subr.bf16.mxu0 0
  %1690 = vmatpush1.bf16.msra.mxu0 0
  %1691 = vmatprep.subr.bf16.mxu0 0
  %1692 = vmatpush1.bf16.msra.mxu0 0
  %1693 = vmatprep.subr.bf16.mxu0 0
  %1694 = vmatpush1.bf16.msra.mxu0 0
  %1695 = vmatprep.subr.bf16.mxu0 0
  %1696 = vmatpush1.bf16.msra.mxu0 0
  %1697 = vmatprep.subr.bf16.mxu0 0
  %1698 = vmatpush1.bf16.msra.mxu0 0
  %1699 = vmatprep.subr.bf16.mxu0 0
  %1700 = vmatpush1.bf16.msra.mxu0 0
  %1701 = vmatprep.subr.bf16.mxu0 0
  %1702 = vmatpush1.bf16.msra.mxu0 0
  %1703 = vmatprep.subr.bf16.mxu0 0
  %1704 = vmatpush1.bf16.msra.mxu0 0
  %1705 = vmatprep.subr.bf16.mxu0 0
  %1706 = vmatpush1.bf16.msra.mxu0 0
  %1707 = vmatprep.subr.bf16.mxu0 0
  %1708 = vmatpush1.bf16.msra.mxu0 0
  %1709 = vmatprep.mubr.bf16.mxu0 0
  %1710 = vmatmul.mubr.bf16.gmra.mrb[0].mxu0 %v1675
  %v1711 = vpop.f32.mrb[0].mxu0
  %v1712 = vadd.f32 0.0, %v1711
  %v1713 = vpop.f32.mrb[0].mxu0
  %v1714 = vpop.f32.mrb[0].mxu0
  %v1715 = vpop.f32.mrb[0].mxu0
  %1716 = vdwg.mxu0
  %v1717 = vadd.f32 %v1669, %v1712
  %v1718 = vxor.u32 %v1717, 2147483648
  %v1719 = vmul.f32 %v1718, 1.442695
  %v1720 = vpow.pop %v1719
  %v1721 = vadd.f32 %v1720, 1.0
  %v1722 = vrcp.pop %v1721
  %v1723 = vmul.f32 1.0, %v1722
  %v1724 = vtanh.pop %v1717
  %v1725 = vmul.f32 %v1723, %v1662
  %1727 = vrot.lane.b32.xlu0 %v1724, 96
  %v1728 = vpop.permute.xlu0 %1727
  %v1730 = vmul.f32 %v1723, %v1728
  %1732 = vrot.lane.b32.xlu0 %v1730, 16
  %v1733 = vpop.permute.xlu0 %1732
  %v1735 = vadd.f32 %v1725, %v1733
  %v1736 = vtanh.pop %v1735
  %1738 = vrot.lane.b32.xlu0 %v1736, 32
  %v1739 = vpop.permute.xlu0 %1738
  %v1741 = vmul.f32 %v1723, %v1739
  %v1742 = vadd.f32 %v1572, %v1521
  %v1743 = vpack.c.bf16 %v1741, %v1741
  %1745 = vrot.lane.b32.xlu0 %v1743, 80
  %v1746 = vpop.permute.xlu0 %1745
  %v1748 = vsel %vm1601, %v1746, 0
  %1750 = vmatprep.subr.bf16.mxu0 0
  %1751 = vmatpush1.bf16.msra.mxu0 %v1599
  %1752 = vmatprep.subr.bf16.mxu0 0
  %1753 = vmatpush1.bf16.msra.mxu0 0
  %1754 = vmatprep.subr.bf16.mxu0 0
  %1755 = vmatpush1.bf16.msra.mxu0 0
  %1756 = vmatprep.subr.bf16.mxu0 0
  %1757 = vmatpush1.bf16.msra.mxu0 0
  %1758 = vmatprep.subr.bf16.mxu0 0
  %1759 = vmatpush1.bf16.msra.mxu0 0
  %1760 = vmatprep.subr.bf16.mxu0 0
  %1761 = vmatpush1.bf16.msra.mxu0 0
  %1762 = vmatprep.subr.bf16.mxu0 0
  %1763 = vmatpush1.bf16.msra.mxu0 0
  %1764 = vmatprep.subr.bf16.mxu0 0
  %1765 = vmatpush1.bf16.msra.mxu0 0
  %1766 = vmatprep.subr.bf16.mxu0 0
  %1767 = vmatpush1.bf16.msra.mxu0 0
  %1768 = vmatprep.subr.bf16.mxu0 0
  %1769 = vmatpush1.bf16.msra.mxu0 0
  %1770 = vmatprep.subr.bf16.mxu0 0
  %1771 = vmatpush1.bf16.msra.mxu0 0
  %1772 = vmatprep.subr.bf16.mxu0 0
  %1773 = vmatpush1.bf16.msra.mxu0 0
  %1774 = vmatprep.subr.bf16.mxu0 0
  %1775 = vmatpush1.bf16.msra.mxu0 0
  %1776 = vmatprep.subr.bf16.mxu0 0
  %1777 = vmatpush1.bf16.msra.mxu0 0
  %1778 = vmatprep.subr.bf16.mxu0 0
  %1779 = vmatpush1.bf16.msra.mxu0 0
  %1780 = vmatprep.subr.bf16.mxu0 0
  %1781 = vmatpush1.bf16.msra.mxu0 0
  %1782 = vmatprep.mubr.bf16.mxu0 0
  %1783 = vmatmul.mubr.bf16.gmra.mrb[0].mxu0 %v1748
  %v1784 = vpop.f32.mrb[0].mxu0
  %v1785 = vadd.f32 0.0, %v1784
  %v1786 = vpop.f32.mrb[0].mxu0
  %v1787 = vpop.f32.mrb[0].mxu0
  %v1788 = vpop.f32.mrb[0].mxu0
  %1789 = vdwg.mxu0
  %v1790 = vadd.f32 %v1742, %v1785
  %v1791 = vxor.u32 %v1790, 2147483648
  %v1792 = vmul.f32 %v1791, 1.442695
  %v1793 = vpow.pop %v1792
  %v1794 = vadd.f32 %v1793, 1.0
  %v1795 = vrcp.pop %v1794
  %v1796 = vmul.f32 1.0, %v1795
  %v1797 = vtanh.pop %v1790
  %v1798 = vmul.f32 %v1796, %v1735
  %1800 = vrot.lane.b32.xlu0 %v1797, 96
  %v1801 = vpop.permute.xlu0 %1800
  %v1803 = vmul.f32 %v1796, %v1801
  %1805 = vrot.lane.b32.xlu0 %v1803, 16
  %v1806 = vpop.permute.xlu0 %1805
  %v1808 = vadd.f32 %v1798, %v1806
  %v1809 = vtanh.pop %v1808
  %1811 = vrot.lane.b32.xlu0 %v1809, 32
  %v1812 = vpop.permute.xlu0 %1811
  %v1814 = vmul.f32 %v1796, %v1812
  %v1815 = vadd.f32 %v1575, %v1521
  %v1816 = vpack.c.bf16 %v1814, %v1814
  %1818 = vrot.lane.b32.xlu0 %v1816, 80
  %v1819 = vpop.permute.xlu0 %1818
  %v1821 = vsel %vm1601, %v1819, 0
  %1823 = vmatprep.subr.bf16.mxu0 0
  %1824 = vmatpush1.bf16.msra.mxu0 %v1599
  %1825 = vmatprep.subr.bf16.mxu0 0
  %1826 = vmatpush1.bf16.msra.mxu0 0
  %1827 = vmatprep.subr.bf16.mxu0 0
  %1828 = vmatpush1.bf16.msra.mxu0 0
  %1829 = vmatprep.subr.bf16.mxu0 0
  %1830 = vmatpush1.bf16.msra.mxu0 0
  %1831 = vmatprep.subr.bf16.mxu0 0
  %1832 = vmatpush1.bf16.msra.mxu0 0
  %1833 = vmatprep.subr.bf16.mxu0 0
  %1834 = vmatpush1.bf16.msra.mxu0 0
  %1835 = vmatprep.subr.bf16.mxu0 0
  %1836 = vmatpush1.bf16.msra.mxu0 0
  %1837 = vmatprep.subr.bf16.mxu0 0
  %1838 = vmatpush1.bf16.msra.mxu0 0
  %1839 = vmatprep.subr.bf16.mxu0 0
  %1840 = vmatpush1.bf16.msra.mxu0 0
  %1841 = vmatprep.subr.bf16.mxu0 0
  %1842 = vmatpush1.bf16.msra.mxu0 0
  %1843 = vmatprep.subr.bf16.mxu0 0
  %1844 = vmatpush1.bf16.msra.mxu0 0
  %1845 = vmatprep.subr.bf16.mxu0 0
  %1846 = vmatpush1.bf16.msra.mxu0 0
  %1847 = vmatprep.subr.bf16.mxu0 0
  %1848 = vmatpush1.bf16.msra.mxu0 0
  %1849 = vmatprep.subr.bf16.mxu0 0
  %1850 = vmatpush1.bf16.msra.mxu0 0
  %1851 = vmatprep.subr.bf16.mxu0 0
  %1852 = vmatpush1.bf16.msra.mxu0 0
  %1853 = vmatprep.subr.bf16.mxu0 0
  %1854 = vmatpush1.bf16.msra.mxu0 0
  %1855 = vmatprep.mubr.bf16.mxu0 0
  %1856 = vmatmul.mubr.bf16.gmra.mrb[0].mxu0 %v1821
  %v1857 = vpop.f32.mrb[0].mxu0
  %v1858 = vadd.f32 0.0, %v1857
  %v1859 = vpop.f32.mrb[0].mxu0
  %v1860 = vpop.f32.mrb[0].mxu0
  %v1861 = vpop.f32.mrb[0].mxu0
  %1862 = vdwg.mxu0
  %v1863 = vadd.f32 %v1815, %v1858
  %v1864 = vxor.u32 %v1863, 2147483648
  %v1865 = vmul.f32 %v1864, 1.442695
  %v1866 = vpow.pop %v1865
  %v1867 = vadd.f32 %v1866, 1.0
  %v1868 = vrcp.pop %v1867
  %v1869 = vmul.f32 1.0, %v1868
  %v1870 = vtanh.pop %v1863
  %v1871 = vmul.f32 %v1869, %v1808
  %1873 = vrot.lane.b32.xlu0 %v1870, 96
  %v1874 = vpop.permute.xlu0 %1873
  %v1876 = vmul.f32 %v1869, %v1874
  %1878 = vrot.lane.b32.xlu0 %v1876, 16
  %v1879 = vpop.permute.xlu0 %1878
  %v1881 = vadd.f32 %v1871, %v1879
  %v1882 = vtanh.pop %v1881
  %1884 = vrot.lane.b32.xlu0 %v1882, 32
  %v1885 = vpop.permute.xlu0 %1884
  %v1887 = vmul.f32 %v1869, %v1885
  %v1888 = vadd.f32 %v1580, %v1521
  %v1889 = vpack.c.bf16 %v1887, %v1887
  %1891 = vrot.lane.b32.xlu0 %v1889, 80
  %v1892 = vpop.permute.xlu0 %1891
  %v1894 = vsel %vm1601, %v1892, 0
  %1896 = vmatprep.subr.bf16.mxu0 0
  %1897 = vmatpush1.bf16.msra.mxu0 %v1599
  %1898 = vmatprep.subr.bf16.mxu0 0
  %1899 = vmatpush1.bf16.msra.mxu0 0
  %1900 = vmatprep.subr.bf16.mxu0 0
  %1901 = vmatpush1.bf16.msra.mxu0 0
  %1902 = vmatprep.subr.bf16.mxu0 0
  %1903 = vmatpush1.bf16.msra.mxu0 0
  %1904 = vmatprep.subr.bf16.mxu0 0
  %1905 = vmatpush1.bf16.msra.mxu0 0
  %1906 = vmatprep.subr.bf16.mxu0 0
  %1907 = vmatpush1.bf16.msra.mxu0 0
  %1908 = vmatprep.subr.bf16.mxu0 0
  %1909 = vmatpush1.bf16.msra.mxu0 0
  %1910 = vmatprep.subr.bf16.mxu0 0
  %1911 = vmatpush1.bf16.msra.mxu0 0
  %1912 = vmatprep.subr.bf16.mxu0 0
  %1913 = vmatpush1.bf16.msra.mxu0 0
  %1914 = vmatprep.subr.bf16.mxu0 0
  %1915 = vmatpush1.bf16.msra.mxu0 0
  %1916 = vmatprep.subr.bf16.mxu0 0
  %1917 = vmatpush1.bf16.msra.mxu0 0
  %1918 = vmatprep.subr.bf16.mxu0 0
  %1919 = vmatpush1.bf16.msra.mxu0 0
  %1920 = vmatprep.subr.bf16.mxu0 0
  %1921 = vmatpush1.bf16.msra.mxu0 0
  %1922 = vmatprep.subr.bf16.mxu0 0
  %1923 = vmatpush1.bf16.msra.mxu0 0
  %1924 = vmatprep.subr.bf16.mxu0 0
  %1925 = vmatpush1.bf16.msra.mxu0 0
  %1926 = vmatprep.subr.bf16.mxu0 0
  %1927 = vmatpush1.bf16.msra.mxu0 0
  %1928 = vmatprep.mubr.bf16.mxu0 0
  %1929 = vmatmul.mubr.bf16.gmra.mrb[0].mxu0 %v1894
  %v1930 = vpop.f32.mrb[0].mxu0
  %v1931 = vadd.f32 0.0, %v1930
  %v1932 = vpop.f32.mrb[0].mxu0
  %v1933 = vpop.f32.mrb[0].mxu0
  %v1934 = vpop.f32.mrb[0].mxu0
  %1935 = vdwg.mxu0
  %v1936 = vadd.f32 %v1888, %v1931
  %v1937 = vxor.u32 %v1936, 2147483648
  %v1938 = vmul.f32 %v1937, 1.442695
  %v1939 = vpow.pop %v1938
  %v1940 = vadd.f32 %v1939, 1.0
  %v1941 = vrcp.pop %v1940
  %v1942 = vmul.f32 1.0, %v1941
  %v1943 = vtanh.pop %v1936
  %v1944 = vmul.f32 %v1942, %v1881
  %1946 = vrot.lane.b32.xlu0 %v1943, 96
  %v1947 = vpop.permute.xlu0 %1946
  %v1949 = vmul.f32 %v1942, %v1947
  %1951 = vrot.lane.b32.xlu0 %v1949, 16
  %v1952 = vpop.permute.xlu0 %1951
  %v1954 = vadd.f32 %v1944, %v1952
  %v1955 = vtanh.pop %v1954
  %1957 = vrot.lane.b32.xlu0 %v1955, 32
  %v1958 = vpop.permute.xlu0 %1957
  %v1960 = vmul.f32 %v1942, %v1958
  %v1961 = vadd.f32 %v1583, %v1521
  %v1962 = vpack.c.bf16 %v1960, %v1960
  %1964 = vrot.lane.b32.xlu0 %v1962, 80
  %v1965 = vpop.permute.xlu0 %1964
  %v1967 = vsel %vm1601, %v1965, 0
  %1969 = vmatprep.subr.bf16.mxu0 0
  %1970 = vmatpush1.bf16.msra.mxu0 %v1599
  %1971 = vmatprep.subr.bf16.mxu0 0
  %1972 = vmatpush1.bf16.msra.mxu0 0
  %1973 = vmatprep.subr.bf16.mxu0 0
  %1974 = vmatpush1.bf16.msra.mxu0 0
  %1975 = vmatprep.subr.bf16.mxu0 0
  %1976 = vmatpush1.bf16.msra.mxu0 0
  %1977 = vmatprep.subr.bf16.mxu0 0
  %1978 = vmatpush1.bf16.msra.mxu0 0
  %1979 = vmatprep.subr.bf16.mxu0 0
  %1980 = vmatpush1.bf16.msra.mxu0 0
  %1981 = vmatprep.subr.bf16.mxu0 0
  %1982 = vmatpush1.bf16.msra.mxu0 0
  %1983 = vmatprep.subr.bf16.mxu0 0
  %1984 = vmatpush1.bf16.msra.mxu0 0
  %1985 = vmatprep.subr.bf16.mxu0 0
  %1986 = vmatpush1.bf16.msra.mxu0 0
  %1987 = vmatprep.subr.bf16.mxu0 0
  %1988 = vmatpush1.bf16.msra.mxu0 0
  %1989 = vmatprep.subr.bf16.mxu0 0
  %1990 = vmatpush1.bf16.msra.mxu0 0
  %1991 = vmatprep.subr.bf16.mxu0 0
  %1992 = vmatpush1.bf16.msra.mxu0 0
  %1993 = vmatprep.subr.bf16.mxu0 0
  %1994 = vmatpush1.bf16.msra.mxu0 0
  %1995 = vmatprep.subr.bf16.mxu0 0
  %1996 = vmatpush1.bf16.msra.mxu0 0
  %1997 = vmatprep.subr.bf16.mxu0 0
  %1998 = vmatpush1.bf16.msra.mxu0 0
  %1999 = vmatprep.subr.bf16.mxu0 0
  %2000 = vmatpush1.bf16.msra.mxu0 0
  %2001 = vmatprep.mubr.bf16.mxu0 0
  %2002 = vmatmul.mubr.bf16.gmra.mrb[0].mxu0 %v1967
  %v2003 = vpop.f32.mrb[0].mxu0
  %v2004 = vadd.f32 0.0, %v2003
  %v2005 = vpop.f32.mrb[0].mxu0
  %v2006 = vpop.f32.mrb[0].mxu0
  %v2007 = vpop.f32.mrb[0].mxu0
  %2008 = vdwg.mxu0
  %v2009 = vadd.f32 %v1961, %v2004
  %v2010 = vxor.u32 %v2009, 2147483648
  %v2011 = vmul.f32 %v2010, 1.442695
  %v2012 = vpow.pop %v2011
  %v2013 = vadd.f32 %v2012, 1.0
  %v2014 = vrcp.pop %v2013
  %v2015 = vmul.f32 1.0, %v2014
  %v2016 = vtanh.pop %v2009
  %v2017 = vmul.f32 %v2015, %v1954
  %2019 = vrot.lane.b32.xlu0 %v2016, 96
  %v2020 = vpop.permute.xlu0 %2019
  %v2022 = vmul.f32 %v2015, %v2020
  %2024 = vrot.lane.b32.xlu0 %v2022, 16
  %v2025 = vpop.permute.xlu0 %2024
  %v2027 = vadd.f32 %v2017, %v2025
  %v2028 = vtanh.pop %v2027
  %2030 = vrot.lane.b32.xlu0 %v2028, 32
  %v2031 = vpop.permute.xlu0 %2030
  %v2033 = vmul.f32 %v2015, %v2031
  %v2034 = vadd.f32 %v1588, %v1521
  %v2035 = vpack.c.bf16 %v2033, %v2033
  %2037 = vrot.lane.b32.xlu0 %v2035, 80
  %v2038 = vpop.permute.xlu0 %2037
  %v2040 = vsel %vm1601, %v2038, 0
  %2042 = vmatprep.subr.bf16.mxu0 0
  %2043 = vmatpush1.bf16.msra.mxu0 %v1599
  %2044 = vmatprep.subr.bf16.mxu0 0
  %2045 = vmatpush1.bf16.msra.mxu0 0
  %2046 = vmatprep.subr.bf16.mxu0 0
  %2047 = vmatpush1.bf16.msra.mxu0 0
  %2048 = vmatprep.subr.bf16.mxu0 0
  %2049 = vmatpush1.bf16.msra.mxu0 0
  %2050 = vmatprep.subr.bf16.mxu0 0
  %2051 = vmatpush1.bf16.msra.mxu0 0
  %2052 = vmatprep.subr.bf16.mxu0 0
  %2053 = vmatpush1.bf16.msra.mxu0 0
  %2054 = vmatprep.subr.bf16.mxu0 0
  %2055 = vmatpush1.bf16.msra.mxu0 0
  %2056 = vmatprep.subr.bf16.mxu0 0
  %2057 = vmatpush1.bf16.msra.mxu0 0
  %2058 = vmatprep.subr.bf16.mxu0 0
  %2059 = vmatpush1.bf16.msra.mxu0 0
  %2060 = vmatprep.subr.bf16.mxu0 0
  %2061 = vmatpush1.bf16.msra.mxu0 0
  %2062 = vmatprep.subr.bf16.mxu0 0
  %2063 = vmatpush1.bf16.msra.mxu0 0
  %2064 = vmatprep.subr.bf16.mxu0 0
  %2065 = vmatpush1.bf16.msra.mxu0 0
  %2066 = vmatprep.subr.bf16.mxu0 0
  %2067 = vmatpush1.bf16.msra.mxu0 0
  %2068 = vmatprep.subr.bf16.mxu0 0
  %2069 = vmatpush1.bf16.msra.mxu0 0
  %2070 = vmatprep.subr.bf16.mxu0 0
  %2071 = vmatpush1.bf16.msra.mxu0 0
  %2072 = vmatprep.subr.bf16.mxu0 0
  %2073 = vmatpush1.bf16.msra.mxu0 0
  %2074 = vmatprep.mubr.bf16.mxu0 0
  %2075 = vmatmul.mubr.bf16.gmra.mrb[0].mxu0 %v2040
  %v2076 = vpop.f32.mrb[0].mxu0
  %v2077 = vadd.f32 0.0, %v2076
  %v2078 = vpop.f32.mrb[0].mxu0
  %v2079 = vpop.f32.mrb[0].mxu0
  %v2080 = vpop.f32.mrb[0].mxu0
  %2081 = vdwg.mxu0
  %v2082 = vadd.f32 %v2034, %v2077
  %v2083 = vxor.u32 %v2082, 2147483648
  %v2084 = vmul.f32 %v2083, 1.442695
  %v2085 = vpow.pop %v2084
  %v2086 = vadd.f32 %v2085, 1.0
  %v2087 = vrcp.pop %v2086
  %v2088 = vmul.f32 1.0, %v2087
  %v2089 = vtanh.pop %v2082
  %v2090 = vmul.f32 %v2088, %v2027
  %2092 = vrot.lane.b32.xlu0 %v2089, 96
  %v2093 = vpop.permute.xlu0 %2092
  %v2095 = vmul.f32 %v2088, %v2093
  %2097 = vrot.lane.b32.xlu0 %v2095, 16
  %v2098 = vpop.permute.xlu0 %2097
  %v2100 = vadd.f32 %v2090, %v2098
  %v2101 = vtanh.pop %v2100
  %2103 = vrot.lane.b32.xlu0 %v2101, 32
  %v2104 = vpop.permute.xlu0 %2103
  %v2106 = vmul.f32 %v2088, %v2104
  %v2107 = vadd.f32 %v1591, %v1521
  %v2108 = vpack.c.bf16 %v2106, %v2106
  %2110 = vrot.lane.b32.xlu0 %v2108, 80
  %v2111 = vpop.permute.xlu0 %2110
  %v2113 = vsel %vm1601, %v2111, 0
  %2115 = vmatprep.subr.bf16.mxu0 0
  %2116 = vmatpush1.bf16.msra.mxu0 %v1599
  %2117 = vmatprep.subr.bf16.mxu0 0
  %2118 = vmatpush1.bf16.msra.mxu0 0
  %2119 = vmatprep.subr.bf16.mxu0 0
  %2120 = vmatpush1.bf16.msra.mxu0 0
  %2121 = vmatprep.subr.bf16.mxu0 0
  %2122 = vmatpush1.bf16.msra.mxu0 0
  %2123 = vmatprep.subr.bf16.mxu0 0
  %2124 = vmatpush1.bf16.msra.mxu0 0
  %2125 = vmatprep.subr.bf16.mxu0 0
  %2126 = vmatpush1.bf16.msra.mxu0 0
  %2127 = vmatprep.subr.bf16.mxu0 0
  %2128 = vmatpush1.bf16.msra.mxu0 0
  %2129 = vmatprep.subr.bf16.mxu0 0
  %2130 = vmatpush1.bf16.msra.mxu0 0
  %2131 = vmatprep.subr.bf16.mxu0 0
  %2132 = vmatpush1.bf16.msra.mxu0 0
  %2133 = vmatprep.subr.bf16.mxu0 0
  %2134 = vmatpush1.bf16.msra.mxu0 0
  %2135 = vmatprep.subr.bf16.mxu0 0
  %2136 = vmatpush1.bf16.msra.mxu0 0
  %2137 = vmatprep.subr.bf16.mxu0 0
  %2138 = vmatpush1.bf16.msra.mxu0 0
  %2139 = vmatprep.subr.bf16.mxu0 0
  %2140 = vmatpush1.bf16.msra.mxu0 0
  %2141 = vmatprep.subr.bf16.mxu0 0
  %2142 = vmatpush1.bf16.msra.mxu0 0
  %2143 = vmatprep.subr.bf16.mxu0 0
  %2144 = vmatpush1.bf16.msra.mxu0 0
  %2145 = vmatprep.subr.bf16.mxu0 0
  %2146 = vmatpush1.bf16.msra.mxu0 0
  %2147 = vmatprep.mubr.bf16.mxu0 0
  %2148 = vmatmul.mubr.bf16.gmra.mrb[0].mxu0 %v2113
  %v2149 = vpop.f32.mrb[0].mxu0
  %v2150 = vadd.f32 0.0, %v2149
  %v2151 = vpop.f32.mrb[0].mxu0
  %v2152 = vpop.f32.mrb[0].mxu0
  %v2153 = vpop.f32.mrb[0].mxu0
  %2154 = vdwg.mxu0
  %v2155 = vadd.f32 %v2107, %v2150
  %v2156 = vxor.u32 %v2155, 2147483648
  %v2157 = vmul.f32 %v2156, 1.442695
  %v2158 = vpow.pop %v2157
  %v2159 = vadd.f32 %v2158, 1.0
  %v2160 = vrcp.pop %v2159
  %v2161 = vmul.f32 1.0, %v2160
  %v2162 = vtanh.pop %v2155
  %v2163 = vmul.f32 %v2161, %v2100
  %2165 = vrot.lane.b32.xlu0 %v2162, 96
  %v2166 = vpop.permute.xlu0 %2165
  %v2168 = vmul.f32 %v2161, %v2166
  %2170 = vrot.lane.b32.xlu0 %v2168, 16
  %v2171 = vpop.permute.xlu0 %2170
  %v2173 = vadd.f32 %v2163, %v2171
  %v2174 = vtanh.pop %v2173
  %2176 = vrot.lane.b32.xlu0 %v2174, 32
  %v2177 = vpop.permute.xlu0 %2176
  %v2179 = vmul.f32 %v2161, %v2177
  %v2180 = vlaneseq
  %v2181 = vshrl.u32 %v2180, 7
  %v2182 = vsub.s32 0, %v2181
  %v2183 = vrot.slane %v36, %v2182
  %2185 = vrot.lane.b32.xlu0 %v2179, 80
  %v2186 = vpop.permute.xlu0 %2185
  %v2187 = vsel %vm1601, %v2186, 0
  %2189 = vmatprep.subr.mxu0 0.0
  %2190 = vmatpush1.msra.mxu0 %v31
  %2191 = vmatprep.subr.mxu0 0.0
  %2192 = vmatpush1.msra.mxu0 %v32
  %2193 = vmatprep.subr.mxu0 0.0
  %2194 = vmatpush1.msra.mxu0 0.0
  %2195 = vmatprep.subr.mxu0 0.0
  %2196 = vmatpush1.msra.mxu0 0.0
  %2197 = vmatprep.subr.mxu0 0.0
  %2198 = vmatpush1.msra.mxu0 0.0
  %2199 = vmatprep.subr.mxu0 0.0
  %2200 = vmatpush1.msra.mxu0 0.0
  %2201 = vmatprep.subr.mxu0 0.0
  %2202 = vmatpush1.msra.mxu0 0.0
  %2203 = vmatprep.subr.mxu0 0.0
  %2204 = vmatpush1.msra.mxu0 0.0
  %2205 = vmatprep.subr.mxu0 0.0
  %2206 = vmatpush1.msra.mxu0 0.0
  %2207 = vmatprep.subr.mxu0 0.0
  %2208 = vmatpush1.msra.mxu0 0.0
  %2209 = vmatprep.subr.mxu0 0.0
  %2210 = vmatpush1.msra.mxu0 0.0
  %2211 = vmatprep.subr.mxu0 0.0
  %2212 = vmatpush1.msra.mxu0 0.0
  %2213 = vmatprep.subr.mxu0 0.0
  %2214 = vmatpush1.msra.mxu0 0.0
  %2215 = vmatprep.subr.mxu0 0.0
  %2216 = vmatpush1.msra.mxu0 0.0
  %2217 = vmatprep.subr.mxu0 0.0
  %2218 = vmatpush1.msra.mxu0 0.0
  %2219 = vmatprep.subr.mxu0 0.0
  %2220 = vmatpush1.msra.mxu0 0.0
  %2221 = vmatprep.subr.mxu0 0.0
  %2222 = vmatpush1.msra.mxu0 0.0
  %2223 = vmatprep.subr.mxu0 0.0
  %2224 = vmatpush1.msra.mxu0 0.0
  %2225 = vmatprep.subr.mxu0 0.0
  %2226 = vmatpush1.msra.mxu0 0.0
  %2227 = vmatprep.subr.mxu0 0.0
  %2228 = vmatpush1.msra.mxu0 0.0
  %2229 = vmatprep.subr.mxu0 0.0
  %2230 = vmatpush1.msra.mxu0 0.0
  %2231 = vmatprep.subr.mxu0 0.0
  %2232 = vmatpush1.msra.mxu0 0.0
  %2233 = vmatprep.subr.mxu0 0.0
  %2234 = vmatpush1.msra.mxu0 0.0
  %2235 = vmatprep.subr.mxu0 0.0
  %2236 = vmatpush1.msra.mxu0 0.0
  %2237 = vmatprep.subr.mxu0 0.0
  %2238 = vmatpush1.msra.mxu0 0.0
  %2239 = vmatprep.subr.mxu0 0.0
  %2240 = vmatpush1.msra.mxu0 0.0
  %2241 = vmatprep.subr.mxu0 0.0
  %2242 = vmatpush1.msra.mxu0 0.0
  %2243 = vmatprep.subr.mxu0 0.0
  %2244 = vmatpush1.msra.mxu0 0.0
  %2245 = vmatprep.subr.mxu0 0.0
  %2246 = vmatpush1.msra.mxu0 0.0
  %2247 = vmatprep.subr.mxu0 0.0
  %2248 = vmatpush1.msra.mxu0 0.0
  %2249 = vmatprep.subr.mxu0 0.0
  %2250 = vmatpush1.msra.mxu0 0.0
  %2251 = vmatprep.subr.mxu0 0.0
  %2252 = vmatpush1.msra.mxu0 0.0
  %2253 = vmatprep.mubr.f32.mxu0 0.0
  %2254 = vmatmul.mubr.f32.gmra.mrb[0].mxu0 %v2187
  %v2255 = vpop.f32.mrb[0].mxu0
  %v2256 = vadd.f32 %v2183, %v2255
  %v2257 = vpop.f32.mrb[0].mxu0
  %2258 = vdwg.mxu0
  %2260 = vrot.lane.b32.xlu0 %v1460, 64
  %v2261 = vpop.permute.xlu0 %2260
  %vm2263 = vcmask 523264
  %v2264 = vsel %vm2263, %v2256, %v2261
  %vm2265 = vcmask 588800
  %v2266 = vsel %vm2265, %v2264, 0.0
  %2267 = vst [vmem:[%s4] sm:$0xff] %v2266
  // Predicated region
  $region18: #{forward.1} parent=0 // pred_check
    _
  $region19: #{forward.1} parent=0 // pred_check_branch
    %2269 = sbr.rel (0) target = $region21
  $region20: #{forward.1} parent=0 // pred_region
    _
  $region21: #{forward.1} parent=0 // pred_fallthru
    _
  // Predicated region
  $region22: #{forward.1} parent=0 // pred_check
    _
  $region23: #{forward.1} parent=0 // pred_check_branch
    %2271 = sbr.rel (0) target = $region25
  $region24: #{forward.1} parent=0 // pred_region
    _
  $region25: #{forward.1} parent=0 // pred_fallthru
    _

</llo_original>
